<compile_context>
chip_gen: v7x
topology: tpu7x:2x2x1
jax: 0.10.0
libtpu: 0.0.40
codegen_flags: <defaults>
</compile_context>

<pallas_src>
import functools

import jax
import jax.numpy as jnp
from jax.experimental import pallas as pl
from jax.experimental.pallas import tpu as pltpu


@functools.lru_cache(maxsize=1)
def _vmem_limit_bytes():
    # Generation-aware scoped VMEM limit: 3/4 of physical VMEM, capped.
    try:
        cap = int(pltpu.get_tpu_info().vmem_capacity_bytes)
    except Exception:
        cap = 64 * 1024 * 1024
    return max(32 * 1024 * 1024, min((cap * 3) // 4, 100 * 1024 * 1024))


def _compiler_params():
    return pltpu.CompilerParams(dimension_semantics=("parallel",),
                                vmem_limit_bytes=_vmem_limit_bytes())


def _group_maps(C, G):
    """One-hot channel->group map (C,G) and its transpose (G,C)."""
    cg = C // G
    chan = jnp.arange(C)
    M = jnp.zeros((C, G), jnp.float32).at[chan, chan // cg].set(1.0)
    return M, jnp.transpose(M)


# --------------------------- GroupNorm + SiLU (in-kernel body) ---------------------------

def _gn_silu_body(x2d, gamma, beta, M, MT, eps, n_per_group):
    """x2d: (S, C) in input dtype; gamma/beta: (1, C); M: (C, G); MT: (G, C).

    Two-pass GroupNorm (mean first, then E[(x-mean)^2]) in f32, followed by SiLU.
    Returns (S, C) f32."""
    xf = x2d.astype(jnp.float32)
    s1_c = jnp.sum(xf, axis=0, keepdims=True)                              # (1, C)
    mean_g = jnp.dot(s1_c, M, preferred_element_type=jnp.float32) / n_per_group
    mean_c = jnp.dot(mean_g, MT, preferred_element_type=jnp.float32)       # (1, C)
    xc = xf - mean_c                                                       # (S, C)
    ss_c = jnp.sum(xc * xc, axis=0, keepdims=True)                         # (1, C)
    var_g = jnp.dot(ss_c, M, preferred_element_type=jnp.float32) / n_per_group
    inv_c = jnp.dot(jax.lax.rsqrt(var_g + eps), MT,
                    preferred_element_type=jnp.float32)                    # (1, C)
    scale = gamma.astype(jnp.float32) * inv_c
    y = xc * scale + beta.astype(jnp.float32)
    return y * jax.nn.sigmoid(y)


# --------------------- fused GroupNorm + SiLU + Conv2d 3x3 (pad=1) ----------------------

def _gn_silu_conv2d_kernel(*refs, res_mode, eps, n_per_group):
    # res_mode: 0 = bias only, 1 = + identity residual, 2 = + 1x1-projected residual
    if res_mode == 0:
        x_ref, g_ref, b_ref, m_ref, mt_ref, w_ref, cb_ref, o_ref = refs
        r_ref = rw_ref = None
    elif res_mode == 1:
        x_ref, g_ref, b_ref, m_ref, mt_ref, w_ref, cb_ref, r_ref, o_ref = refs
        rw_ref = None
    else:
        x_ref, g_ref, b_ref, m_ref, mt_ref, w_ref, cb_ref, r_ref, rw_ref, o_ref = refs

    _, H, W, C = x_ref.shape
    Cout = o_ref.shape[-1]
    S = H * W
    mm_dtype = x_ref.dtype

    # --- GroupNorm + SiLU on the resident block -------------------------------------
    y = _gn_silu_body(x_ref[0].reshape(S, C), g_ref[...], b_ref[...],
                      m_ref[...], mt_ref[...], eps, n_per_group)
    y = y.astype(mm_dtype).reshape(H, W, C)

    # --- im2col: dx taps folded into the contraction (K = 3*C) ----------------------
    # Pad H by one zero row each side and W by one zero col each side; the three dx
    # shifted views are contiguous static W-slices packed along channels.
    zr = jnp.zeros((1, W, C), mm_dtype)
    yp = jnp.concatenate([zr, y, zr], axis=0)                 # (H+2, W, C)
    zc = jnp.zeros((H + 2, 1, C), mm_dtype)
    ypw = jnp.concatenate([zc, yp, zc], axis=1)               # (H+2, W+2, C)
    xcol = jnp.concatenate(
        [ypw[:, 0:W, :], ypw[:, 1:W + 1, :], ypw[:, 2:W + 2, :]],
        axis=-1).reshape((H + 2) * W, 3 * C)                  # ((H+2)*W, 3C)

    w_all = w_ref[...]                                        # (3, 3C, Cout)
    acc = jnp.broadcast_to(cb_ref[...].astype(jnp.float32), (S, Cout))
    for dy in range(3):                                       # 3 matmuls, K = 3*C
        win = xcol[dy * W:dy * W + S, :]                      # static W-multiple offset
        acc = acc + jnp.dot(win, w_all[dy], preferred_element_type=jnp.float32)

    if res_mode == 2:                                         # fused 1x1 nin_shortcut
        xres = r_ref[0].reshape(S, r_ref.shape[-1])
        acc = acc + jnp.dot(xres, rw_ref[...], preferred_element_type=jnp.float32)
        o_ref[0] = acc.reshape(H, W, Cout).astype(o_ref.dtype)
    elif res_mode == 1:                                       # fused identity shortcut
        out = acc.reshape(H, W, Cout) + r_ref[0].astype(jnp.float32)
        o_ref[0] = out.astype(o_ref.dtype)
    else:
        o_ref[0] = acc.reshape(H, W, Cout).astype(o_ref.dtype)


def gn_silu_conv2d(x, gamma, beta, num_groups, eps, w, b,
                   residual=None, residual_proj=None):
    """GroupNorm(num_groups) + SiLU + Conv2d 3x3 pad=1 (+ optional fused shortcut).

    x: (N,H,W,Cin), w: (3,3,Cin,Cout), b: (Cout,).  If `residual_proj` (Cin,Cout) is
    given, `residual` is projected by it (its bias must already be folded into b)."""
    N, H, W, Cin = x.shape
    Cout = w.shape[-1]
    G = int(num_groups)
    M, MT = _group_maps(Cin, G)
    w2 = w.reshape(3, 3 * Cin, Cout)

    if residual is None:
        res_mode = 0
    elif residual_proj is None:
        res_mode = 1
    else:
        res_mode = 2

    in_specs = [
        pl.BlockSpec((1, H, W, Cin), lambda n: (n, 0, 0, 0)),
        pl.BlockSpec((1, Cin), lambda n: (0, 0)),
        pl.BlockSpec((1, Cin), lambda n: (0, 0)),
        pl.BlockSpec((Cin, G), lambda n: (0, 0)),
        pl.BlockSpec((G, Cin), lambda n: (0, 0)),
        pl.BlockSpec((3, 3 * Cin, Cout), lambda n: (0, 0, 0)),
        pl.BlockSpec((1, Cout), lambda n: (0, 0)),
    ]
    args = [x, gamma.reshape(1, Cin), beta.reshape(1, Cin), M, MT, w2,
            b.reshape(1, Cout)]
    if res_mode >= 1:
        Cr = residual.shape[-1]
        in_specs.append(pl.BlockSpec((1, H, W, Cr), lambda n: (n, 0, 0, 0)))
        args.append(residual)
    if res_mode == 2:
        in_specs.append(pl.BlockSpec(residual_proj.shape, lambda n: (0, 0)))
        args.append(residual_proj)

    kernel = functools.partial(_gn_silu_conv2d_kernel, res_mode=res_mode,
                               eps=float(eps),
                               n_per_group=float(H * W * (Cin // G)))
    return pl.pallas_call(
        kernel,
        out_shape=jax.ShapeDtypeStruct((N, H, W, Cout), x.dtype),
        grid=(N,),
        in_specs=in_specs,
        out_specs=pl.BlockSpec((1, H, W, Cout), lambda n: (n, 0, 0, 0)),
        compiler_params=_compiler_params(),
    )(*args)


# -------------------- fused GroupNorm + SiLU + Conv3d 3x3x3 (pad=1) ---------------------

def _gn_silu_conv3d_kernel(*refs, res_mode, eps, n_per_group):
    # res_mode: 0 = bias only, 1 = + residual + per-frame (1-alpha) scaling epilogue
    if res_mode == 0:
        x_ref, g_ref, b_ref, m_ref, mt_ref, w_ref, cb_ref, o_ref = refs
        r_ref = oma_ref = None
    else:
        (x_ref, g_ref, b_ref, m_ref, mt_ref, w_ref, cb_ref,
         r_ref, oma_ref, o_ref) = refs

    _, T, H, W, C = x_ref.shape
    Cout = o_ref.shape[-1]
    HW = H * W
    S = T * HW
    mm_dtype = x_ref.dtype

    # --- GroupNorm + SiLU on the resident block (stats over T*H*W per group) --------
    y = _gn_silu_body(x_ref[0].reshape(S, C), g_ref[...], b_ref[...],
                      m_ref[...], mt_ref[...], eps, n_per_group)
    y = y.astype(mm_dtype).reshape(T, H, W, C)

    # --- im2col: dy and dx taps folded into the contraction (K = 9*C) ---------------
    # Pad T / H / W by one zero plane/row/col each side; the nine (dy,dx) shifted views
    # are contiguous static slices packed along channels.  No masks needed.
    zfr = jnp.zeros((1, H, W, C), mm_dtype)
    yp = jnp.concatenate([zfr, y, zfr], axis=0)                    # (T+2, H, W, C)
    zrow = jnp.zeros((T + 2, 1, W, C), mm_dtype)
    yph = jnp.concatenate([zrow, yp, zrow], axis=1)                # (T+2, H+2, W, C)
    zcol = jnp.zeros((T + 2, H + 2, 1, C), mm_dtype)
    ypw = jnp.concatenate([zcol, yph, zcol], axis=2)               # (T+2, H+2, W+2, C)

    variants = [ypw[:, dy:dy + H, dx:dx + W, :]
                for dy in range(3) for dx in range(3)]             # each (T+2, H, W, C)
    xcol = jnp.concatenate(variants, axis=-1).reshape((T + 2) * HW, 9 * C)

    w_all = w_ref[...]                                             # (3, 9C, Cout)
    acc = jnp.broadcast_to(cb_ref[...].astype(jnp.float32), (S, Cout))
    for dt in range(3):                                            # 3 matmuls, K = 9*C
        win = xcol[dt * HW:dt * HW + S, :]                         # static HW-multiple offset
        acc = acc + jnp.dot(win, w_all[dt], preferred_element_type=jnp.float32)

    if res_mode == 0:
        o_ref[0] = acc.reshape(T, H, W, Cout).astype(o_ref.dtype)
    else:
        # Fused residual + AlphaBlender epilogue (vectorized, single store):
        #   out[t] = residual[t] + (1 - alpha[b, t]) * conv[t]
        oma = oma_ref[0].astype(jnp.float32).reshape(T, 1, 1)      # (T, 1, 1)
        out3 = acc.reshape(T, HW, Cout)
        res3 = r_ref[0].astype(jnp.float32).reshape(T, HW, Cout)
        o_ref[0] = (res3 + oma * out3).reshape(T, H, W, Cout).astype(o_ref.dtype)


def gn_silu_conv3d(x, gamma, beta, num_groups, eps, w, b,
                   residual=None, one_minus_alpha=None):
    """GroupNorm + SiLU + Conv3d 3x3x3 pad=1.

    x: (B,T,H,W,Cin), w: (3,3,3,Cin,Cout), b: (Cout,).  With residual/one_minus_alpha
    the kernel writes  residual + (1-alpha)[b,t] * (conv(gn_silu(x)) + b)  — the fused
    TemporalResnetBlock residual + AlphaBlender epilogue."""
    B, T, H, W, Cin = x.shape
    Cout = w.shape[-1]
    G = int(num_groups)
    M, MT = _group_maps(Cin, G)
    w3 = w.reshape(3, 9 * Cin, Cout)
    res_mode = 0 if residual is None else 1

    in_specs = [
        pl.BlockSpec((1, T, H, W, Cin), lambda bb: (bb, 0, 0, 0, 0)),
        pl.BlockSpec((1, Cin), lambda bb: (0, 0)),
        pl.BlockSpec((1, Cin), lambda bb: (0, 0)),
        pl.BlockSpec((Cin, G), lambda bb: (0, 0)),
        pl.BlockSpec((G, Cin), lambda bb: (0, 0)),
        pl.BlockSpec((3, 9 * Cin, Cout), lambda bb: (0, 0, 0)),
        pl.BlockSpec((1, Cout), lambda bb: (0, 0)),
    ]
    args = [x, gamma.reshape(1, Cin), beta.reshape(1, Cin), M, MT, w3,
            b.reshape(1, Cout)]
    if res_mode == 1:
        in_specs.append(pl.BlockSpec((1, T, H, W, Cout), lambda bb: (bb, 0, 0, 0, 0)))
        args.append(residual)
        in_specs.append(pl.BlockSpec((1, T, 1), lambda bb: (bb, 0, 0)))
        args.append(one_minus_alpha.reshape(B, T, 1).astype(jnp.float32))

    kernel = functools.partial(_gn_silu_conv3d_kernel, res_mode=res_mode,
                               eps=float(eps),
                               n_per_group=float(T * H * W * (Cin // G)))
    return pl.pallas_call(
        kernel,
        out_shape=jax.ShapeDtypeStruct((B, T, H, W, Cout), x.dtype),
        grid=(B,),
        in_specs=in_specs,
        out_specs=pl.BlockSpec((1, T, H, W, Cout), lambda bb: (bb, 0, 0, 0, 0)),
        compiler_params=_compiler_params(),
    )(*args)


# ------------------------------------ Module wrapper ------------------------------------

def _num_groups(c):
    return c // 4 if c <= 32 else 32


class SpatioTemporalResnetBlockPallas:
    def __init__(self, *, in_channels, out_channels=None, dropout=0.0,
                 temb_channels=512, temporal_eps=1e-6, merge_factor=0.5, key=None):
        self.in_channels = in_channels
        self.out_channels = in_channels if out_channels is None else out_channels
        self.dropout = dropout              # identity at inference
        self.temporal_eps = temporal_eps
        self.merge_factor = merge_factor
        self.groups_in = _num_groups(self.in_channels)
        self.groups_out = _num_groups(self.out_channels)
        self.params = self._init_params(
            key if key is not None else jax.random.PRNGKey(0), temb_channels)

    def _init_params(self, key, temb_channels):
        Cin, Cout = self.in_channels, self.out_channels
        keys = jax.random.split(key, 16)

        def rnd(k, shape, scale=0.05):
            return scale * jax.random.normal(k, shape, jnp.float32)

        p = {}
        # spatial ResnetBlock
        p['s_norm1_g'] = jnp.ones((Cin,), jnp.float32)
        p['s_norm1_b'] = jnp.zeros((Cin,), jnp.float32)
        p['s_conv1_w'] = rnd(keys[0], (3, 3, Cin, Cout))
        p['s_conv1_b'] = rnd(keys[1], (Cout,))
        p['s_norm2_g'] = jnp.ones((Cout,), jnp.float32)
        p['s_norm2_b'] = jnp.zeros((Cout,), jnp.float32)
        p['s_conv2_w'] = rnd(keys[2], (3, 3, Cout, Cout))
        p['s_conv2_b'] = rnd(keys[3], (Cout,))
        if Cin != Cout:
            p['s_nin_w'] = rnd(keys[4], (Cin, Cout))
            p['s_nin_b'] = rnd(keys[5], (Cout,))
        # temporal ResnetBlock (in == out == Cout)
        p['t_norm1_g'] = jnp.ones((Cout,), jnp.float32)
        p['t_norm1_b'] = jnp.zeros((Cout,), jnp.float32)
        p['t_conv1_w'] = rnd(keys[6], (3, 3, 3, Cout, Cout))
        p['t_conv1_b'] = rnd(keys[7], (Cout,))
        p['t_norm2_g'] = jnp.ones((Cout,), jnp.float32)
        p['t_norm2_b'] = jnp.zeros((Cout,), jnp.float32)
        p['t_conv2_w'] = rnd(keys[8], (3, 3, 3, Cout, Cout))
        p['t_conv2_b'] = rnd(keys[9], (Cout,))
        # temb_proj params exist in the torch __init__ but are unused with temb=None
        p['s_temb_w'] = rnd(keys[10], (temb_channels, Cout))
        p['s_temb_b'] = rnd(keys[11], (Cout,))
        p['t_temb_w'] = rnd(keys[12], (temb_channels, Cout))
        p['t_temb_b'] = rnd(keys[13], (Cout,))
        # AlphaBlender 'learned_with_images'
        p['mix_factor'] = jnp.array([self.merge_factor], jnp.float32)
        return p

    def __call__(self, x_nchw, image_only_indicator, temb=None):
        assert temb is None, "only temb=None path is implemented"
        p = self.params
        Cin, Cout = self.in_channels, self.out_channels
        BF, cin, H, W = x_nchw.shape
        assert cin == Cin
        B, T = image_only_indicator.shape
        assert BF == B * T

        x = jnp.transpose(x_nchw, (0, 2, 3, 1))                   # (BF, H, W, Cin)

        # ---- spatial ResnetBlock (2 fused GN+SiLU+conv kernels) --------------------
        h = gn_silu_conv2d(x, p['s_norm1_g'], p['s_norm1_b'], self.groups_in, 1e-6,
                           p['s_conv1_w'], p['s_conv1_b'])
        # dropout: identity (inference)
        if Cin != Cout:
            # conv2(gn_silu(h)) + (conv2_b + nin_b) + x @ nin_w   (fused shortcut)
            hs = gn_silu_conv2d(h, p['s_norm2_g'], p['s_norm2_b'], self.groups_out,
                                1e-6, p['s_conv2_w'], p['s_conv2_b'] + p['s_nin_b'],
                                residual=x, residual_proj=p['s_nin_w'])
        else:
            hs = gn_silu_conv2d(h, p['s_norm2_g'], p['s_norm2_b'], self.groups_out,
                                1e-6, p['s_conv2_w'], p['s_conv2_b'], residual=x)

        # ---- temporal ResnetBlock on (B, T, H, W, C) == torch (B, C, T, H, W) ------
        hs5 = hs.reshape(B, T, H, W, Cout)
        ht = gn_silu_conv3d(hs5, p['t_norm1_g'], p['t_norm1_b'], self.groups_out,
                            self.temporal_eps, p['t_conv1_w'], p['t_conv1_b'])

        # ---- final conv3d with fused residual + AlphaBlender epilogue --------------
        #   alpha*hs5 + (1-alpha)*(hs5 + conv2(ht)) == hs5 + (1-alpha)*conv2(ht)
        alpha_bt = jnp.where(image_only_indicator.astype(bool),
                             jnp.float32(1.0),
                             jax.nn.sigmoid(p['mix_factor'])[0])  # (B, T)
        out5 = gn_silu_conv3d(ht, p['t_norm2_g'], p['t_norm2_b'], self.groups_out,
                              self.temporal_eps, p['t_conv2_w'], p['t_conv2_b'],
                              residual=hs5, one_minus_alpha=1.0 - alpha_bt)

        out = out5.reshape(BF, H, W, Cout)
        return jnp.transpose(out, (0, 3, 1, 2))                   # (BF, Cout, H, W)


# ----------------------------- pure-JAX reference (test) --------------------------------

def _reference_forward(block, x_nchw, image_only_indicator):
    p = block.params
    Cin, Cout = block.in_channels, block.out_channels
    BF, _, H, W = x_nchw.shape
    B, T = image_only_indicator.shape
    hp = jax.lax.Precision.HIGHEST

    def gn_silu(x, g, b, groups, eps):
        N, S, C = x.shape
        cg = C // groups
        xg = x.reshape(N, S, groups, cg).astype(jnp.float32)
        mean = jnp.mean(xg, axis=(1, 3), keepdims=True)
        var = jnp.mean((xg - mean) ** 2, axis=(1, 3), keepdims=True)
        xn = (xg - mean) * jax.lax.rsqrt(var + eps)
        xn = xn.reshape(N, S, C) * g + b
        return xn * jax.nn.sigmoid(xn)

    def conv2d(x, w, b):
        y = jax.lax.conv_general_dilated(
            x, w, (1, 1), 'SAME',
            dimension_numbers=('NHWC', 'HWIO', 'NHWC'), precision=hp)
        return y + b

    def conv3d(x, w, b):
        y = jax.lax.conv_general_dilated(
            x, w, (1, 1, 1), 'SAME',
            dimension_numbers=('NDHWC', 'DHWIO', 'NDHWC'), precision=hp)
        return y + b

    x = jnp.transpose(x_nchw, (0, 2, 3, 1))
    h = gn_silu(x.reshape(BF, H * W, Cin), p['s_norm1_g'], p['s_norm1_b'],
                block.groups_in, 1e-6).reshape(BF, H, W, Cin)
    h = conv2d(h, p['s_conv1_w'], p['s_conv1_b'])
    h = gn_silu(h.reshape(BF, H * W, Cout), p['s_norm2_g'], p['s_norm2_b'],
                block.groups_out, 1e-6).reshape(BF, H, W, Cout)
    h = conv2d(h, p['s_conv2_w'], p['s_conv2_b'])
    if Cin != Cout:
        shortcut = jnp.einsum('nhwc,cd->nhwd', x, p['s_nin_w'],
                              precision=hp) + p['s_nin_b']
    else:
        shortcut = x
    h_spatial = h + shortcut

    hs5 = h_spatial.reshape(B, T, H, W, Cout)
    ht = gn_silu(hs5.reshape(B, T * H * W, Cout), p['t_norm1_g'], p['t_norm1_b'],
                 block.groups_out, block.temporal_eps).reshape(B, T, H, W, Cout)
    ht = conv3d(ht, p['t_conv1_w'], p['t_conv1_b'])
    ht = gn_silu(ht.reshape(B, T * H * W, Cout), p['t_norm2_g'], p['t_norm2_b'],
                 block.groups_out, block.temporal_eps).reshape(B, T, H, W, Cout)
    ht = conv3d(ht, p['t_conv2_w'], p['t_conv2_b']) + hs5

    alpha = jnp.where(image_only_indicator.astype(bool), 1.0,
                      jax.nn.sigmoid(p['mix_factor'])[0])   # (B, T)
    alpha = alpha[:, :, None, None, None]
    out5 = alpha * hs5 + (1.0 - alpha) * ht
    out = out5.reshape(BF, H, W, Cout)
    return jnp.transpose(out, (0, 3, 1, 2))


# ----------------------------------------- main -----------------------------------------

if __name__ == "__main__":
    B, T = 2, 4
    Cin, Cout = 4, 8
    H = W = 8

    block = SpatioTemporalResnetBlockPallas(
        in_channels=Cin, out_channels=Cout, dropout=0.0,
        temporal_eps=1e-6, merge_factor=0.5, key=jax.random.PRNGKey(0))

    kx = jax.random.PRNGKey(0)
    x = jax.random.normal(kx, (B * T, Cin, H, W), jnp.float32)
    # image_only_indicator: (B, num_frames); mark frame 0 of each clip as image-only
    image_only_indicator = jnp.zeros((B, T), jnp.float32).at[:, 0].set(1.0)

    out = jax.block_until_ready(block(x, image_only_indicator, temb=None))
    assert out.shape == (B * T, Cout, H, W)
    assert bool(jnp.all(jnp.isfinite(out)))

    ref = jax.block_until_ready(_reference_forward(block, x, image_only_indicator))
    max_err = float(jnp.max(jnp.abs(out - ref)))
    assert max_err < 2e-3, f"mismatch vs reference: max abs err = {max_err}"
    print("KERNEL_OK")
</pallas_src>

<mosaic_0001>
module attributes {stable_mosaic.version = 11 : i64} {
  func.func @_gn_silu_conv2d_kernel(%arg0: i32, %arg1: memref<1x8x8x4xf32, #tpu.memory_space<vmem>>, %arg2: memref<1x4xf32, #tpu.memory_space<vmem>>, %arg3: memref<1x4xf32, #tpu.memory_space<vmem>>, %arg4: memref<4x1xf32, #tpu.memory_space<vmem>>, %arg5: memref<1x4xf32, #tpu.memory_space<vmem>>, %arg6: memref<3x12x8xf32, #tpu.memory_space<vmem>>, %arg7: memref<1x8xf32, #tpu.memory_space<vmem>>, %arg8: memref<1x8x8x8xf32, #tpu.memory_space<vmem>>) attributes {dimension_semantics = [#tpu.dimension_semantics<parallel>], iteration_bounds = array<i64: 8>, scalar_prefetch = 0 : i64, scratch_operands = 0 : i64, tpu.core_type = #tpu.core_type<tc>, window_params = [{transform_indices = @transform_0, window_bounds = array<i64: 1, 8, 8, 4>}, {pipeline_mode = #tpu.pipeline_mode<synchronous>, transform_indices = @transform_1, window_bounds = array<i64: 1, 4>}, {pipeline_mode = #tpu.pipeline_mode<synchronous>, transform_indices = @transform_2, window_bounds = array<i64: 1, 4>}, {pipeline_mode = #tpu.pipeline_mode<synchronous>, transform_indices = @transform_3, window_bounds = array<i64: 4, 1>}, {pipeline_mode = #tpu.pipeline_mode<synchronous>, transform_indices = @transform_4, window_bounds = array<i64: 1, 4>}, {pipeline_mode = #tpu.pipeline_mode<synchronous>, transform_indices = @transform_5, window_bounds = array<i64: 3, 12, 8>}, {pipeline_mode = #tpu.pipeline_mode<synchronous>, transform_indices = @transform_6, window_bounds = array<i64: 1, 8>}, {transform_indices = @transform_7, window_bounds = array<i64: 1, 8, 8, 8>}]} {
    %c0 = arith.constant 0 : index
    %c0_0 = arith.constant 0 : index
    %c0_1 = arith.constant 0 : index
    %c0_2 = arith.constant 0 : index
    %0 = vector.load %arg1[%c0, %c0_0, %c0_1, %c0_2] : memref<1x8x8x4xf32, #tpu.memory_space<vmem>>, vector<1x8x8x4xf32>
    %1 = vector.shape_cast %0 : vector<1x8x8x4xf32> to vector<8x8x4xf32>
    %2 = vector.shape_cast %1 : vector<8x8x4xf32> to vector<64x4xf32>
    %c0_3 = arith.constant 0 : index
    %c0_4 = arith.constant 0 : index
    %3 = vector.load %arg2[%c0_3, %c0_4] : memref<1x4xf32, #tpu.memory_space<vmem>>, vector<1x4xf32>
    %c0_5 = arith.constant 0 : index
    %c0_6 = arith.constant 0 : index
    %4 = vector.load %arg3[%c0_5, %c0_6] : memref<1x4xf32, #tpu.memory_space<vmem>>, vector<1x4xf32>
    %c0_7 = arith.constant 0 : index
    %c0_8 = arith.constant 0 : index
    %5 = vector.load %arg4[%c0_7, %c0_8] : memref<4x1xf32, #tpu.memory_space<vmem>>, vector<4x1xf32>
    %c0_9 = arith.constant 0 : index
    %c0_10 = arith.constant 0 : index
    %6 = vector.load %arg5[%c0_9, %c0_10] : memref<1x4xf32, #tpu.memory_space<vmem>>, vector<1x4xf32>
    %cst = arith.constant dense<0.000000e+00> : vector<4xf32>
    %7 = vector.multi_reduction <add>, %2, %cst [0] : vector<64x4xf32> to vector<4xf32>
    %8 = vector.shape_cast %7 : vector<4xf32> to vector<1x4xf32>
    %cst_11 = arith.constant dense<0.000000e+00> : vector<1x1xf32>
    %9 = tpu.matmul %8, %5, %cst_11 {dimension_numbers = #tpu.dot_dimension_numbers<[1], [0], [0], [1], [0, 0, 1, 1], [], []>} : vector<1x4xf32>, vector<4x1xf32>, vector<1x1xf32> -> vector<1x1xf32>
    %cst_12 = arith.constant 2.560000e+02 : f32
    %10 = vector.broadcast %cst_12 : f32 to vector<1x1xf32>
    %11 = arith.divf %9, %10 : vector<1x1xf32>
    %cst_13 = arith.constant dense<0.000000e+00> : vector<1x4xf32>
    %12 = tpu.matmul %11, %6, %cst_13 {dimension_numbers = #tpu.dot_dimension_numbers<[1], [0], [0], [1], [0, 0, 1, 1], [], []>} : vector<1x1xf32>, vector<1x4xf32>, vector<1x4xf32> -> vector<1x4xf32>
    %13 = vector.broadcast %12 : vector<1x4xf32> to vector<64x4xf32>
    %14 = arith.subf %2, %13 : vector<64x4xf32>
    %15 = arith.mulf %14, %14 : vector<64x4xf32>
    %cst_14 = arith.constant dense<0.000000e+00> : vector<4xf32>
    %16 = vector.multi_reduction <add>, %15, %cst_14 [0] : vector<64x4xf32> to vector<4xf32>
    %17 = vector.shape_cast %16 : vector<4xf32> to vector<1x4xf32>
    %cst_15 = arith.constant dense<0.000000e+00> : vector<1x1xf32>
    %18 = tpu.matmul %17, %5, %cst_15 {dimension_numbers = #tpu.dot_dimension_numbers<[1], [0], [0], [1], [0, 0, 1, 1], [], []>} : vector<1x4xf32>, vector<4x1xf32>, vector<1x1xf32> -> vector<1x1xf32>
    %cst_16 = arith.constant 2.560000e+02 : f32
    %19 = vector.broadcast %cst_16 : f32 to vector<1x1xf32>
    %20 = arith.divf %18, %19 : vector<1x1xf32>
    %cst_17 = arith.constant 9.99999997E-7 : f32
    %21 = vector.broadcast %cst_17 : f32 to vector<1x1xf32>
    %22 = arith.addf %20, %21 : vector<1x1xf32>
    %23 = math.rsqrt %22 : vector<1x1xf32>
    %cst_18 = arith.constant dense<0.000000e+00> : vector<1x4xf32>
    %24 = tpu.matmul %23, %6, %cst_18 {dimension_numbers = #tpu.dot_dimension_numbers<[1], [0], [0], [1], [0, 0, 1, 1], [], []>} : vector<1x1xf32>, vector<1x4xf32>, vector<1x4xf32> -> vector<1x4xf32>
    %25 = arith.mulf %3, %24 : vector<1x4xf32>
    %26 = vector.broadcast %25 : vector<1x4xf32> to vector<64x4xf32>
    %27 = arith.mulf %14, %26 : vector<64x4xf32>
    %28 = vector.broadcast %4 : vector<1x4xf32> to vector<64x4xf32>
    %29 = arith.addf %27, %28 : vector<64x4xf32>
    %30 = arith.negf %29 : vector<64x4xf32>
    %31 = math.exp %30 : vector<64x4xf32>
    %cst_19 = arith.constant 1.000000e+00 : f32
    %32 = vector.broadcast %cst_19 : f32 to vector<64x4xf32>
    %33 = arith.addf %32, %31 : vector<64x4xf32>
    %34 = arith.divf %32, %33 : vector<64x4xf32>
    %35 = arith.mulf %29, %34 : vector<64x4xf32>
    %36 = vector.shape_cast %35 : vector<64x4xf32> to vector<8x8x4xf32>
    %cst_20 = arith.constant 0.000000e+00 : f32
    %37 = vector.broadcast %cst_20 : f32 to vector<1x8x4xf32>
    %38 = tpu.concatenate %37, %36, %37 in 0 : vector<1x8x4xf32>, vector<8x8x4xf32>, vector<1x8x4xf32> -> vector<10x8x4xf32>
    %cst_21 = arith.constant 0.000000e+00 : f32
    %39 = vector.broadcast %cst_21 : f32 to vector<10x1x4xf32>
    %40 = tpu.concatenate %39, %38, %39 in 1 : vector<10x1x4xf32>, vector<10x8x4xf32>, vector<10x1x4xf32> -> vector<10x10x4xf32>
    %41 = vector.extract_strided_slice %40 {offsets = [0, 0, 0], sizes = [10, 8, 4], strides = [1, 1, 1]} : vector<10x10x4xf32> to vector<10x8x4xf32>
    %42 = vector.extract_strided_slice %40 {offsets = [0, 1, 0], sizes = [10, 8, 4], strides = [1, 1, 1]} : vector<10x10x4xf32> to vector<10x8x4xf32>
    %43 = vector.extract_strided_slice %40 {offsets = [0, 2, 0], sizes = [10, 8, 4], strides = [1, 1, 1]} : vector<10x10x4xf32> to vector<10x8x4xf32>
    %44 = tpu.concatenate %41, %42, %43 in 2 : vector<10x8x4xf32>, vector<10x8x4xf32>, vector<10x8x4xf32> -> vector<10x8x12xf32>
    %45 = vector.shape_cast %44 : vector<10x8x12xf32> to vector<80x12xf32>
    %c0_22 = arith.constant 0 : index
    %c0_23 = arith.constant 0 : index
    %c0_24 = arith.constant 0 : index
    %46 = vector.load %arg6[%c0_22, %c0_23, %c0_24] : memref<3x12x8xf32, #tpu.memory_space<vmem>>, vector<3x12x8xf32>
    %c0_25 = arith.constant 0 : index
    %c0_26 = arith.constant 0 : index
    %47 = vector.load %arg7[%c0_25, %c0_26] : memref<1x8xf32, #tpu.memory_space<vmem>>, vector<1x8xf32>
    %48 = vector.shape_cast %47 : vector<1x8xf32> to vector<1x8xf32>
    %49 = vector.broadcast %48 : vector<1x8xf32> to vector<64x8xf32>
    %50 = vector.extract_strided_slice %45 {offsets = [0, 0], sizes = [64, 12], strides = [1, 1]} : vector<80x12xf32> to vector<64x12xf32>
    %51 = vector.extract_strided_slice %46 {offsets = [0, 0, 0], sizes = [1, 12, 8], strides = [1, 1, 1]} : vector<3x12x8xf32> to vector<1x12x8xf32>
    %52 = vector.shape_cast %51 : vector<1x12x8xf32> to vector<12x8xf32>
    %cst_27 = arith.constant dense<0.000000e+00> : vector<64x8xf32>
    %53 = tpu.matmul %50, %52, %cst_27 {dimension_numbers = #tpu.dot_dimension_numbers<[1], [0], [0], [1], [0, 0, 1, 1], [], []>} : vector<64x12xf32>, vector<12x8xf32>, vector<64x8xf32> -> vector<64x8xf32>
    %54 = arith.addf %49, %53 : vector<64x8xf32>
    %55 = vector.extract_strided_slice %45 {offsets = [8, 0], sizes = [64, 12], strides = [1, 1]} : vector<80x12xf32> to vector<64x12xf32>
    %56 = vector.extract_strided_slice %46 {offsets = [1, 0, 0], sizes = [1, 12, 8], strides = [1, 1, 1]} : vector<3x12x8xf32> to vector<1x12x8xf32>
    %57 = vector.shape_cast %56 : vector<1x12x8xf32> to vector<12x8xf32>
    %cst_28 = arith.constant dense<0.000000e+00> : vector<64x8xf32>
    %58 = tpu.matmul %55, %57, %cst_28 {dimension_numbers = #tpu.dot_dimension_numbers<[1], [0], [0], [1], [0, 0, 1, 1], [], []>} : vector<64x12xf32>, vector<12x8xf32>, vector<64x8xf32> -> vector<64x8xf32>
    %59 = arith.addf %54, %58 : vector<64x8xf32>
    %60 = vector.extract_strided_slice %45 {offsets = [16, 0], sizes = [64, 12], strides = [1, 1]} : vector<80x12xf32> to vector<64x12xf32>
    %61 = vector.extract_strided_slice %46 {offsets = [2, 0, 0], sizes = [1, 12, 8], strides = [1, 1, 1]} : vector<3x12x8xf32> to vector<1x12x8xf32>
    %62 = vector.shape_cast %61 : vector<1x12x8xf32> to vector<12x8xf32>
    %cst_29 = arith.constant dense<0.000000e+00> : vector<64x8xf32>
    %63 = tpu.matmul %60, %62, %cst_29 {dimension_numbers = #tpu.dot_dimension_numbers<[1], [0], [0], [1], [0, 0, 1, 1], [], []>} : vector<64x12xf32>, vector<12x8xf32>, vector<64x8xf32> -> vector<64x8xf32>
    %64 = arith.addf %59, %63 : vector<64x8xf32>
    %65 = vector.shape_cast %64 : vector<64x8xf32> to vector<8x8x8xf32>
    %c0_30 = arith.constant 0 : index
    %c0_31 = arith.constant 0 : index
    %c0_32 = arith.constant 0 : index
    %c0_33 = arith.constant 0 : index
    %66 = vector.load %arg8[%c0_30, %c0_31, %c0_32, %c0_33] : memref<1x8x8x8xf32, #tpu.memory_space<vmem>>, vector<1x8x8x8xf32>
    %67 = vector.shape_cast %66 : vector<1x8x8x8xf32> to vector<8x8x8xf32>
    %68 = vector.shape_cast %65 : vector<8x8x8xf32> to vector<1x8x8x8xf32>
    tpu.vector_store %arg8[%c0_30, %c0_31, %c0_32, %c0_33], %68 {strides = array<i32>} : memref<1x8x8x8xf32, #tpu.memory_space<vmem>>, vector<1x8x8x8xf32>,
    return
  }
  func.func @transform_0(%arg0: i32) -> (i32, i32, i32, i32) {
    %c0_i32 = arith.constant 0 : i32
    %c0_i32_0 = arith.constant 0 : i32
    %c0_i32_1 = arith.constant 0 : i32
    %c0_i32_2 = arith.constant 0 : i32
    return %arg0, %c0_i32, %c0_i32_0, %c0_i32_1 : i32, i32, i32, i32
  }
  func.func @transform_1(%arg0: i32) -> (i32, i32) {
    %c0_i32 = arith.constant 0 : i32
    %c0_i32_0 = arith.constant 0 : i32
    %c0_i32_1 = arith.constant 0 : i32
    return %c0_i32, %c0_i32_0 : i32, i32
  }
  func.func @transform_2(%arg0: i32) -> (i32, i32) {
    %c0_i32 = arith.constant 0 : i32
    %c0_i32_0 = arith.constant 0 : i32
    %c0_i32_1 = arith.constant 0 : i32
    return %c0_i32, %c0_i32_0 : i32, i32
  }
  func.func @transform_3(%arg0: i32) -> (i32, i32) {
    %c0_i32 = arith.constant 0 : i32
    %c0_i32_0 = arith.constant 0 : i32
    %c0_i32_1 = arith.constant 0 : i32
    return %c0_i32, %c0_i32_0 : i32, i32
  }
  func.func @transform_4(%arg0: i32) -> (i32, i32) {
    %c0_i32 = arith.constant 0 : i32
    %c0_i32_0 = arith.constant 0 : i32
    %c0_i32_1 = arith.constant 0 : i32
    return %c0_i32, %c0_i32_0 : i32, i32
  }
  func.func @transform_5(%arg0: i32) -> (i32, i32, i32) {
    %c0_i32 = arith.constant 0 : i32
    %c0_i32_0 = arith.constant 0 : i32
    %c0_i32_1 = arith.constant 0 : i32
    %c0_i32_2 = arith.constant 0 : i32
    return %c0_i32, %c0_i32_0, %c0_i32_1 : i32, i32, i32
  }
  func.func @transform_6(%arg0: i32) -> (i32, i32) {
    %c0_i32 = arith.constant 0 : i32
    %c0_i32_0 = arith.constant 0 : i32
    %c0_i32_1 = arith.constant 0 : i32
    return %c0_i32, %c0_i32_0 : i32, i32
  }
  func.func @transform_7(%arg0: i32) -> (i32, i32, i32, i32) {
    %c0_i32 = arith.constant 0 : i32
    %c0_i32_0 = arith.constant 0 : i32
    %c0_i32_1 = arith.constant 0 : i32
    %c0_i32_2 = arith.constant 0 : i32
    return %arg0, %c0_i32, %c0_i32_0, %c0_i32_1 : i32, i32, i32, i32
  }
}

</mosaic_0001>

<llo_original>
// kernel: tpu_custom_call.1
$region0: #{tpu_custom_call.1}
  #allocation0 [shape = 'u32[]', space=smem, size = 0x4, offset = 0x4, fixed_abs, tag = 'smem constant byte address 0x4 - core index']
  #allocation1 [shape = 'u32[144,128]{1,0:T(1,128)}', space=vmem, size = 0x12000, scoped, tag = 'internal scratch']
  %s0 = inlined_call_operand.vmem [shape: f32[8,8,8,4], index: 0, kind: input, shape index: {}]
  %s1 = inlined_call_operand.vmem [shape: f32[1,4], index: 1, kind: input, shape index: {}]
  %s2 = inlined_call_operand.vmem [shape: f32[1,4], index: 2, kind: input, shape index: {}]
  %s3 = inlined_call_operand.vmem [shape: f32[4,1], index: 3, kind: input, shape index: {}]
  %s4 = inlined_call_operand.vmem [shape: f32[1,4], index: 4, kind: input, shape index: {}]
  %s5 = inlined_call_operand.vmem [shape: f32[3,12,8], index: 5, kind: input, shape index: {}]
  %s6 = inlined_call_operand.vmem [shape: f32[1,8], index: 6, kind: input, shape index: {}]
  %s7 = inlined_call_operand.hbm [shape: f32[8,8,8,8], index: 7, kind: output, shape index: {}]
  %s8 = sld [smem:[#allocation0]]
  $region61: #{tpu_custom_call.1} parent=0
    _
  %s10 = ssub.s32 1, %s8
  %s11 = scalar_select 0, %s10, %s8
  $region1: #{tpu_custom_call.1} parent=0
    #allocation2 [shape = 'u8[65536]{0}', space=vmem, size = 0x10000, scoped, tag = 'output window, operand 0']
    #allocation3 [shape = 's32[2]{0}', space=sflag, size = 0x8, scoped, tag = 'scoped memory for tpu_custom_call.1']
    %12 = vsyncpa [#allocation3], 0
    %s13 = scalar_lea.sflag [#allocation3], 1
    %14 = vsyncpa %s13, 0
    loop: start=0, step=1, limit=10
    $region2: #{tpu_custom_call.1} parent=1 // loop_pre_header
      _
    $region3: #{tpu_custom_call.1} parent=1 // loop_header
      %s16 = sphi 0, %s20
      %p17 = scmp.ge.s32.totalorder %s16, 10
      %s26 = sphi 0, %s28
      %s29 = sphi 0, %s26
      %s30 = sphi 0, %s29
      %s46 = sphi 0, %s30
      %s50 = sphi 0, %s50
      %s52 = sphi 0, %s50
      %s53 = sphi 0, %s52
      %s67 = sphi 0, %s53
      %s71 = sphi 0, %s71
      %s73 = sphi 0, %s71
      %s74 = sphi 0, %s73
      %s88 = sphi 0, %s74
      %s92 = sphi 0, %s92
      %s94 = sphi 0, %s92
      %s95 = sphi 0, %s94
      %s109 = sphi 0, %s95
      %s113 = sphi 0, %s113
      %s115 = sphi 0, %s113
      %s116 = sphi 0, %s115
      %s130 = sphi 0, %s116
      %s134 = sphi 0, %s134
      %s136 = sphi 0, %s134
      %s137 = sphi 0, %s136
      %s151 = sphi 0, %s137
      %s155 = sphi 0, %s155
      %s157 = sphi 0, %s155
      %s158 = sphi 0, %s157
      %s172 = sphi 0, %s158
      %s178 = sphi 0, %s180
      %s181 = sphi 0, %s178
      %s182 = sphi 0, %s181
      %s198 = sphi 0, %s182
    $region4: #{tpu_custom_call.1} parent=1 // loop_header_branch
      %19 = sbr.rel (%p17) target = $region8
    $region5: #{tpu_custom_call.1} parent=1 // loop_body
      %s21 = ssub.s32 %s16, 1
      %s22 = ssub.s32 %s16, 2
      %s23 = sadd.s32 %s16, 1
      %s24 = ssub.s32 %s16, %s23
      %p25 = scmp.eq.s32.totalorder %s24, 0
      %s27 = sadd.s32 %s26, 1
      %s28 = scalar_select %p25, %s26, %s27
      %p31 = pneg %p25
      %p32 = scmp.eq.s32.totalorder %s16, 7
      %p33 = por %p31, %p32
      %p34 = scmp.ne.s32.totalorder %s26, %s29
      %p35 = scmp.eq.s32.totalorder %s16, 0
      %p36 = por %p34, %p35
      %p37 = scmp.ne.s32.totalorder %s26, %s29
      %p38 = scmp.eq.s32.totalorder %s21, 7
      %p39 = por %p37, %p38
      %p40 = scmp.ne.s32.totalorder %s29, %s30
      %p41 = scmp.eq.s32.totalorder %s21, 0
      %p42 = por %p40, %p41
      %p43 = scmp.ne.s32.totalorder %s29, %s30
      %p44 = scmp.eq.s32.totalorder %s22, 7
      %p45 = por %p43, %p44
      %p47 = scmp.ne.s32.totalorder %s30, %s46
      %p48 = scmp.eq.s32.totalorder %s22, 0
      %p49 = por %p47, %p48
      %s51 = sadd.s32 %s50, 1
      %p54 = scmp.eq.s32.totalorder %s16, 7
      %p55 = scmp.ne.s32.totalorder %s50, %s52
      %p56 = scmp.eq.s32.totalorder %s16, 0
      %p57 = por %p55, %p56
      %p58 = scmp.ne.s32.totalorder %s50, %s52
      %p59 = scmp.eq.s32.totalorder %s21, 7
      %p60 = por %p58, %p59
      %p61 = scmp.ne.s32.totalorder %s52, %s53
      %p62 = scmp.eq.s32.totalorder %s21, 0
      %p63 = por %p61, %p62
      %p64 = scmp.ne.s32.totalorder %s52, %s53
      %p65 = scmp.eq.s32.totalorder %s22, 7
      %p66 = por %p64, %p65
      %p68 = scmp.ne.s32.totalorder %s53, %s67
      %p69 = scmp.eq.s32.totalorder %s22, 0
      %p70 = por %p68, %p69
      %s72 = sadd.s32 %s71, 1
      %p75 = scmp.eq.s32.totalorder %s16, 7
      %p76 = scmp.ne.s32.totalorder %s71, %s73
      %p77 = scmp.eq.s32.totalorder %s16, 0
      %p78 = por %p76, %p77
      %p79 = scmp.ne.s32.totalorder %s71, %s73
      %p80 = scmp.eq.s32.totalorder %s21, 7
      %p81 = por %p79, %p80
      %p82 = scmp.ne.s32.totalorder %s73, %s74
      %p83 = scmp.eq.s32.totalorder %s21, 0
      %p84 = por %p82, %p83
      %p85 = scmp.ne.s32.totalorder %s73, %s74
      %p86 = scmp.eq.s32.totalorder %s22, 7
      %p87 = por %p85, %p86
      %p89 = scmp.ne.s32.totalorder %s74, %s88
      %p90 = scmp.eq.s32.totalorder %s22, 0
      %p91 = por %p89, %p90
      %s93 = sadd.s32 %s92, 1
      %p96 = scmp.eq.s32.totalorder %s16, 7
      %p97 = scmp.ne.s32.totalorder %s92, %s94
      %p98 = scmp.eq.s32.totalorder %s16, 0
      %p99 = por %p97, %p98
      %p100 = scmp.ne.s32.totalorder %s92, %s94
      %p101 = scmp.eq.s32.totalorder %s21, 7
      %p102 = por %p100, %p101
      %p103 = scmp.ne.s32.totalorder %s94, %s95
      %p104 = scmp.eq.s32.totalorder %s21, 0
      %p105 = por %p103, %p104
      %p106 = scmp.ne.s32.totalorder %s94, %s95
      %p107 = scmp.eq.s32.totalorder %s22, 7
      %p108 = por %p106, %p107
      %p110 = scmp.ne.s32.totalorder %s95, %s109
      %p111 = scmp.eq.s32.totalorder %s22, 0
      %p112 = por %p110, %p111
      %s114 = sadd.s32 %s113, 1
      %p117 = scmp.eq.s32.totalorder %s16, 7
      %p118 = scmp.ne.s32.totalorder %s113, %s115
      %p119 = scmp.eq.s32.totalorder %s16, 0
      %p120 = por %p118, %p119
      %p121 = scmp.ne.s32.totalorder %s113, %s115
      %p122 = scmp.eq.s32.totalorder %s21, 7
      %p123 = por %p121, %p122
      %p124 = scmp.ne.s32.totalorder %s115, %s116
      %p125 = scmp.eq.s32.totalorder %s21, 0
      %p126 = por %p124, %p125
      %p127 = scmp.ne.s32.totalorder %s115, %s116
      %p128 = scmp.eq.s32.totalorder %s22, 7
      %p129 = por %p127, %p128
      %p131 = scmp.ne.s32.totalorder %s116, %s130
      %p132 = scmp.eq.s32.totalorder %s22, 0
      %p133 = por %p131, %p132
      %s135 = sadd.s32 %s134, 1
      %p138 = scmp.eq.s32.totalorder %s16, 7
      %p139 = scmp.ne.s32.totalorder %s134, %s136
      %p140 = scmp.eq.s32.totalorder %s16, 0
      %p141 = por %p139, %p140
      %p142 = scmp.ne.s32.totalorder %s134, %s136
      %p143 = scmp.eq.s32.totalorder %s21, 7
      %p144 = por %p142, %p143
      %p145 = scmp.ne.s32.totalorder %s136, %s137
      %p146 = scmp.eq.s32.totalorder %s21, 0
      %p147 = por %p145, %p146
      %p148 = scmp.ne.s32.totalorder %s136, %s137
      %p149 = scmp.eq.s32.totalorder %s22, 7
      %p150 = por %p148, %p149
      %p152 = scmp.ne.s32.totalorder %s137, %s151
      %p153 = scmp.eq.s32.totalorder %s22, 0
      %p154 = por %p152, %p153
      %s156 = sadd.s32 %s155, 1
      %p159 = scmp.eq.s32.totalorder %s16, 7
      %p160 = scmp.ne.s32.totalorder %s155, %s157
      %p161 = scmp.eq.s32.totalorder %s16, 0
      %p162 = por %p160, %p161
      %p163 = scmp.ne.s32.totalorder %s155, %s157
      %p164 = scmp.eq.s32.totalorder %s21, 7
      %p165 = por %p163, %p164
      %p166 = scmp.ne.s32.totalorder %s157, %s158
      %p167 = scmp.eq.s32.totalorder %s21, 0
      %p168 = por %p166, %p167
      %p169 = scmp.ne.s32.totalorder %s157, %s158
      %p170 = scmp.eq.s32.totalorder %s22, 7
      %p171 = por %p169, %p170
      %p173 = scmp.ne.s32.totalorder %s158, %s172
      %p174 = scmp.eq.s32.totalorder %s22, 0
      %p175 = por %p173, %p174
      %s176 = ssub.s32 %s16, %s23
      %p177 = scmp.eq.s32.totalorder %s176, 0
      %s179 = sadd.s32 %s178, 1
      %s180 = scalar_select %p177, %s178, %s179
      %p183 = pneg %p177
      %p184 = scmp.eq.s32.totalorder %s16, 7
      %p185 = por %p183, %p184
      %p186 = scmp.ne.s32.totalorder %s178, %s181
      %p187 = scmp.eq.s32.totalorder %s16, 0
      %p188 = por %p186, %p187
      %p189 = scmp.ne.s32.totalorder %s178, %s181
      %p190 = scmp.eq.s32.totalorder %s21, 7
      %p191 = por %p189, %p190
      %p192 = scmp.ne.s32.totalorder %s181, %s182
      %p193 = scmp.eq.s32.totalorder %s21, 0
      %p194 = por %p192, %p193
      %p195 = scmp.ne.s32.totalorder %s181, %s182
      %p196 = scmp.eq.s32.totalorder %s22, 7
      %p197 = por %p195, %p196
      %p199 = scmp.ne.s32.totalorder %s182, %s198
      %p200 = scmp.eq.s32.totalorder %s22, 0
      %p201 = por %p199, %p200
      %p202 = scmp.le.s32.totalorder 1, %s16
      %p203 = scmp.lt.s32.totalorder %s16, 9
      %p204 = pnand %p202, %p203
      %p205 = pneg %p204
      // Predicated region
      $region9: #{tpu_custom_call.1} parent=5 // pred_check
        _
      $region10: #{tpu_custom_call.1} parent=5 // pred_check_branch
        %207 = sbr.rel (%p204) target = $region12
      $region11: #{tpu_custom_call.1} parent=5 // pred_region
        %s208 = ssub.s32 %s16, 1
        // Predicated region
        $region13: #{tpu_custom_call.1} parent=11 // pred_check
          %p209 = pneg %p63
        $region14: #{tpu_custom_call.1} parent=11 // pred_check_branch
          %211 = sbr.rel (%p209) target = $region16
        $region15: #{tpu_custom_call.1} parent=11 // pred_region
          _
        $region16: #{tpu_custom_call.1} parent=11 // pred_fallthru
          _
        // Predicated region
        $region17: #{tpu_custom_call.1} parent=11 // pred_check
          %p212 = pneg %p84
        $region18: #{tpu_custom_call.1} parent=11 // pred_check_branch
          %214 = sbr.rel (%p212) target = $region20
        $region19: #{tpu_custom_call.1} parent=11 // pred_region
          _
        $region20: #{tpu_custom_call.1} parent=11 // pred_fallthru
          _
        // Predicated region
        $region21: #{tpu_custom_call.1} parent=11 // pred_check
          %p215 = pneg %p105
        $region22: #{tpu_custom_call.1} parent=11 // pred_check_branch
          %217 = sbr.rel (%p215) target = $region24
        $region23: #{tpu_custom_call.1} parent=11 // pred_region
          _
        $region24: #{tpu_custom_call.1} parent=11 // pred_fallthru
          _
        // Predicated region
        $region25: #{tpu_custom_call.1} parent=11 // pred_check
          %p218 = pneg %p126
        $region26: #{tpu_custom_call.1} parent=11 // pred_check_branch
          %220 = sbr.rel (%p218) target = $region28
        $region27: #{tpu_custom_call.1} parent=11 // pred_region
          _
        $region28: #{tpu_custom_call.1} parent=11 // pred_fallthru
          _
        // Predicated region
        $region29: #{tpu_custom_call.1} parent=11 // pred_check
          %p221 = pneg %p147
        $region30: #{tpu_custom_call.1} parent=11 // pred_check_branch
          %223 = sbr.rel (%p221) target = $region32
        $region31: #{tpu_custom_call.1} parent=11 // pred_region
          _
        $region32: #{tpu_custom_call.1} parent=11 // pred_fallthru
          _
        // Predicated region
        $region33: #{tpu_custom_call.1} parent=11 // pred_check
          %p224 = pneg %p168
        $region34: #{tpu_custom_call.1} parent=11 // pred_check_branch
          %226 = sbr.rel (%p224) target = $region36
        $region35: #{tpu_custom_call.1} parent=11 // pred_region
          _
        $region36: #{tpu_custom_call.1} parent=11 // pred_fallthru
          _
      $region12: #{tpu_custom_call.1} parent=5 // pred_fallthru
        _
      %p227 = scmp.lt.s32.totalorder %s16, 8
      // Predicated region
      $region37: #{tpu_custom_call.1} parent=5 // pred_check
        %p228 = pneg %p227
      $region38: #{tpu_custom_call.1} parent=5 // pred_check_branch
        %230 = sbr.rel (%p228) target = $region40
      $region39: #{tpu_custom_call.1} parent=5 // pred_region
        // Predicated region
        $region41: #{tpu_custom_call.1} parent=39 // pred_check
          %p231 = pneg %p36
        $region42: #{tpu_custom_call.1} parent=39 // pred_check_branch
          %233 = sbr.rel (%p231) target = $region44
        $region43: #{tpu_custom_call.1} parent=39 // pred_region
          %p234 = scmp.lt.s32.totalorder %s16, 7
          %s235 = scalar_select %p234, %s16, 7
          %s236 = smul.addr %s235, 8
          %s237 = smul.addr %s236, 8
          %s238 = scalar_lea.vmem %s0, %s237
        $region44: #{tpu_custom_call.1} parent=39 // pred_fallthru
          _
      $region40: #{tpu_custom_call.1} parent=5 // pred_fallthru
        _
      %p239 = scmp.le.s32.totalorder 1, %s16
      %p240 = scmp.lt.s32.totalorder %s16, 9
      %p241 = pnand %p239, %p240
      %p242 = pneg %p241
      // Predicated region
      $region45: #{tpu_custom_call.1} parent=5 // pred_check
        _
      $region46: #{tpu_custom_call.1} parent=5 // pred_check_branch
        %244 = sbr.rel (%p241) target = $region48
      $region47: #{tpu_custom_call.1} parent=5 // pred_region
        %s245 = ssub.s32 %s16, 1
        %p246 = scmp.lt.s32.totalorder %s21, 7
        %s247 = scalar_select %p246, %s21, 7
        %s248 = smul.addr %s247, 8
        %s249 = smul.addr %s248, 8
        %s250 = scalar_lea.vmem %s0, %s249
        %p251 = pneg %p42
        %p252 = pneg %p39
        %p253 = pneg %p63
        %p254 = pneg %p60
        %p255 = pneg %p84
        %p256 = pneg %p81
        %p257 = pneg %p105
        %p258 = pneg %p102
        %p259 = pneg %p126
        %p260 = pneg %p123
        %p261 = pneg %p147
        %p262 = pneg %p144
        %p263 = pneg %p168
        %p264 = pneg %p165
        %p265 = pneg %p194
        %p266 = pneg %p191
        %s267 = sand.u32 %s181, 1
        %s268 = scalar_lea.sflag [#allocation3], %s267
        %s269 = sand.u32 %s181, 1
        %s270 = smul.addr %s269, 64
        %s271 = scalar_lea.vmem [#allocation2], %s270
        %p272 = scmp.lt.s32.totalorder %s21, 7
        %s273 = scalar_select %p272, %s21, 7
        %s274 = smul.addr %s273, 8
        %s275 = smul.addr %s274, 8
        %s276 = scalar_lea.vmem %s0, %s275
        %v277 = vld [vmem:[%s276] sm:$0xff]
        %v278 = vld [vmem:[%s276 + $0x8] sm:$0xff]
        %v279 = vld [vmem:[%s276 + $0x10] sm:$0xff]
        %v280 = vld [vmem:[%s276 + $0x18] sm:$0xff]
        %v281 = vld [vmem:[%s276 + $0x20] sm:$0xff]
        %v282 = vld [vmem:[%s276 + $0x28] sm:$0xff]
        %v283 = vld [vmem:[%s276 + $0x30] sm:$0xff]
        %v284 = vld [vmem:[%s276 + $0x38] sm:$0xff]
        %v285 = vld [vmem:[%s1] sm:$0x1]
        %v286 = vld [vmem:[%s2] sm:$0x1]
        %v287 = vld [vmem:[%s3] sm:$0xf]
        %v288 = vld [vmem:[%s4] sm:$0x1]
        %vm289 = vcmask 31744
        %v290 = vsel %vm289, %v277, 0.0
        %v291 = vsel %vm289, %v278, 0.0
        %v292 = vadd.f32 %v290, %v291
        %v293 = vsel %vm289, %v279, 0.0
        %v294 = vadd.f32 %v292, %v293
        %v295 = vsel %vm289, %v280, 0.0
        %v296 = vadd.f32 %v294, %v295
        %v297 = vsel %vm289, %v281, 0.0
        %v298 = vadd.f32 %v296, %v297
        %v299 = vsel %vm289, %v282, 0.0
        %v300 = vadd.f32 %v298, %v299
        %v301 = vsel %vm289, %v283, 0.0
        %v302 = vadd.f32 %v300, %v301
        %v303 = vsel %vm289, %v284, 0.0
        %v304 = vadd.f32 %v302, %v303
        %v305 = vrot.slane %v304, 4
        %v306 = vadd.f32 %v304, %v305
        %v307 = vrot.slane %v306, 2
        %v308 = vadd.f32 %v306, %v307
        %v309 = vrot.slane %v308, 1
        %v310 = vadd.f32 %v308, %v309
        %v312 = vsel %vm289, %v310, 0
        %vm314 = vcmask 1043456
        %v316 = vsel %vm314, %v287, 0
        %318 = vmatprep.subr.mxu0 0.0
        %319 = vmatpush1.msra.mxu0 %v316
        %320 = vmatprep.subr.mxu0 0.0
        %321 = vmatpush1.msra.mxu0 0.0
        %322 = vmatprep.subr.mxu0 0.0
        %323 = vmatpush1.msra.mxu0 0.0
        %324 = vmatprep.subr.mxu0 0.0
        %325 = vmatpush1.msra.mxu0 0.0
        %326 = vmatprep.subr.mxu0 0.0
        %327 = vmatpush1.msra.mxu0 0.0
        %328 = vmatprep.subr.mxu0 0.0
        %329 = vmatpush1.msra.mxu0 0.0
        %330 = vmatprep.subr.mxu0 0.0
        %331 = vmatpush1.msra.mxu0 0.0
        %332 = vmatprep.subr.mxu0 0.0
        %333 = vmatpush1.msra.mxu0 0.0
        %334 = vmatprep.subr.mxu0 0.0
        %335 = vmatpush1.msra.mxu0 0.0
        %336 = vmatprep.subr.mxu0 0.0
        %337 = vmatpush1.msra.mxu0 0.0
        %338 = vmatprep.subr.mxu0 0.0
        %339 = vmatpush1.msra.mxu0 0.0
        %340 = vmatprep.subr.mxu0 0.0
        %341 = vmatpush1.msra.mxu0 0.0
        %342 = vmatprep.subr.mxu0 0.0
        %343 = vmatpush1.msra.mxu0 0.0
        %344 = vmatprep.subr.mxu0 0.0
        %345 = vmatpush1.msra.mxu0 0.0
        %346 = vmatprep.subr.mxu0 0.0
        %347 = vmatpush1.msra.mxu0 0.0
        %348 = vmatprep.subr.mxu0 0.0
        %349 = vmatpush1.msra.mxu0 0.0
        %350 = vmatprep.subr.mxu0 0.0
        %351 = vmatpush1.msra.mxu0 0.0
        %352 = vmatprep.subr.mxu0 0.0
        %353 = vmatpush1.msra.mxu0 0.0
        %354 = vmatprep.subr.mxu0 0.0
        %355 = vmatpush1.msra.mxu0 0.0
        %356 = vmatprep.subr.mxu0 0.0
        %357 = vmatpush1.msra.mxu0 0.0
        %358 = vmatprep.subr.mxu0 0.0
        %359 = vmatpush1.msra.mxu0 0.0
        %360 = vmatprep.subr.mxu0 0.0
        %361 = vmatpush1.msra.mxu0 0.0
        %362 = vmatprep.subr.mxu0 0.0
        %363 = vmatpush1.msra.mxu0 0.0
        %364 = vmatprep.subr.mxu0 0.0
        %365 = vmatpush1.msra.mxu0 0.0
        %366 = vmatprep.subr.mxu0 0.0
        %367 = vmatpush1.msra.mxu0 0.0
        %368 = vmatprep.subr.mxu0 0.0
        %369 = vmatpush1.msra.mxu0 0.0
        %370 = vmatprep.subr.mxu0 0.0
        %371 = vmatpush1.msra.mxu0 0.0
        %372 = vmatprep.subr.mxu0 0.0
        %373 = vmatpush1.msra.mxu0 0.0
        %374 = vmatprep.subr.mxu0 0.0
        %375 = vmatpush1.msra.mxu0 0.0
        %376 = vmatprep.subr.mxu0 0.0
        %377 = vmatpush1.msra.mxu0 0.0
        %378 = vmatprep.subr.mxu0 0.0
        %379 = vmatpush1.msra.mxu0 0.0
        %380 = vmatprep.subr.mxu0 0.0
        %381 = vmatpush1.msra.mxu0 0.0
        %382 = vmatprep.mubr.f32.mxu0 0.0
        %383 = vmatmul.mubr.f32.gmra.mrb[0].mxu0 %v312
        %v384 = vpop.f32.mrb[0].mxu0
        %v385 = vadd.f32 0.0, %v384
        %v386 = vpop.f32.mrb[0].mxu0
        %387 = vdwg.mxu0
        %v388 = vrcp.pop 256.0
        %v389 = vmul.f32 %v385, %v388
        %vm390 = vcmask 7168
        %v392 = vsel %vm390, %v389, 0
        %vm394 = vcmask 1040384
        %v396 = vsel %vm394, %v288, 0
        %398 = vmatprep.subr.mxu0 0.0
        %399 = vmatpush1.msra.mxu0 %v396
        %400 = vmatprep.subr.mxu0 0.0
        %401 = vmatpush1.msra.mxu0 0.0
        %402 = vmatprep.subr.mxu0 0.0
        %403 = vmatpush1.msra.mxu0 0.0
        %404 = vmatprep.subr.mxu0 0.0
        %405 = vmatpush1.msra.mxu0 0.0
        %406 = vmatprep.subr.mxu0 0.0
        %407 = vmatpush1.msra.mxu0 0.0
        %408 = vmatprep.subr.mxu0 0.0
        %409 = vmatpush1.msra.mxu0 0.0
        %410 = vmatprep.subr.mxu0 0.0
        %411 = vmatpush1.msra.mxu0 0.0
        %412 = vmatprep.subr.mxu0 0.0
        %413 = vmatpush1.msra.mxu0 0.0
        %414 = vmatprep.subr.mxu0 0.0
        %415 = vmatpush1.msra.mxu0 0.0
        %416 = vmatprep.subr.mxu0 0.0
        %417 = vmatpush1.msra.mxu0 0.0
        %418 = vmatprep.subr.mxu0 0.0
        %419 = vmatpush1.msra.mxu0 0.0
        %420 = vmatprep.subr.mxu0 0.0
        %421 = vmatpush1.msra.mxu0 0.0
        %422 = vmatprep.subr.mxu0 0.0
        %423 = vmatpush1.msra.mxu0 0.0
        %424 = vmatprep.subr.mxu0 0.0
        %425 = vmatpush1.msra.mxu0 0.0
        %426 = vmatprep.subr.mxu0 0.0
        %427 = vmatpush1.msra.mxu0 0.0
        %428 = vmatprep.subr.mxu0 0.0
        %429 = vmatpush1.msra.mxu0 0.0
        %430 = vmatprep.subr.mxu0 0.0
        %431 = vmatpush1.msra.mxu0 0.0
        %432 = vmatprep.subr.mxu0 0.0
        %433 = vmatpush1.msra.mxu0 0.0
        %434 = vmatprep.subr.mxu0 0.0
        %435 = vmatpush1.msra.mxu0 0.0
        %436 = vmatprep.subr.mxu0 0.0
        %437 = vmatpush1.msra.mxu0 0.0
        %438 = vmatprep.subr.mxu0 0.0
        %439 = vmatpush1.msra.mxu0 0.0
        %440 = vmatprep.subr.mxu0 0.0
        %441 = vmatpush1.msra.mxu0 0.0
        %442 = vmatprep.subr.mxu0 0.0
        %443 = vmatpush1.msra.mxu0 0.0
        %444 = vmatprep.subr.mxu0 0.0
        %445 = vmatpush1.msra.mxu0 0.0
        %446 = vmatprep.subr.mxu0 0.0
        %447 = vmatpush1.msra.mxu0 0.0
        %448 = vmatprep.subr.mxu0 0.0
        %449 = vmatpush1.msra.mxu0 0.0
        %450 = vmatprep.subr.mxu0 0.0
        %451 = vmatpush1.msra.mxu0 0.0
        %452 = vmatprep.subr.mxu0 0.0
        %453 = vmatpush1.msra.mxu0 0.0
        %454 = vmatprep.subr.mxu0 0.0
        %455 = vmatpush1.msra.mxu0 0.0
        %456 = vmatprep.subr.mxu0 0.0
        %457 = vmatpush1.msra.mxu0 0.0
        %458 = vmatprep.subr.mxu0 0.0
        %459 = vmatpush1.msra.mxu0 0.0
        %460 = vmatprep.subr.mxu0 0.0
        %461 = vmatpush1.msra.mxu0 0.0
        %462 = vmatprep.mubr.f32.mxu0 0.0
        %463 = vmatmul.mubr.f32.gmra.mrb[0].mxu0 %v392
        %v464 = vpop.f32.mrb[0].mxu0
        %v465 = vadd.f32 0.0, %v464
        %v466 = vpop.f32.mrb[0].mxu0
        %467 = vdwg.mxu0
        %v468 = vlaneseq
        %v469 = vshrl.u32 %v468, 7
        %v470 = vsub.s32 0, %v469
        %v471 = vrot.slane %v465, %v470
        %v472 = vsub.f32 %v277, %v471
        %v473 = vsub.f32 %v278, %v471
        %v474 = vsub.f32 %v279, %v471
        %v475 = vsub.f32 %v280, %v471
        %v476 = vsub.f32 %v281, %v471
        %v477 = vsub.f32 %v282, %v471
        %v478 = vsub.f32 %v283, %v471
        %v479 = vsub.f32 %v284, %v471
        %v480 = vmul.f32 %v472, %v472
        %v481 = vmul.f32 %v473, %v473
        %v482 = vmul.f32 %v474, %v474
        %v483 = vmul.f32 %v475, %v475
        %v484 = vmul.f32 %v476, %v476
        %v485 = vmul.f32 %v477, %v477
        %v486 = vmul.f32 %v478, %v478
        %v487 = vmul.f32 %v479, %v479
        %v488 = vsel %vm289, %v480, 0.0
        %v489 = vsel %vm289, %v481, 0.0
        %v490 = vadd.f32 %v488, %v489
        %v491 = vsel %vm289, %v482, 0.0
        %v492 = vadd.f32 %v490, %v491
        %v493 = vsel %vm289, %v483, 0.0
        %v494 = vadd.f32 %v492, %v493
        %v495 = vsel %vm289, %v484, 0.0
        %v496 = vadd.f32 %v494, %v495
        %v497 = vsel %vm289, %v485, 0.0
        %v498 = vadd.f32 %v496, %v497
        %v499 = vsel %vm289, %v486, 0.0
        %v500 = vadd.f32 %v498, %v499
        %v501 = vsel %vm289, %v487, 0.0
        %v502 = vadd.f32 %v500, %v501
        %v503 = vrot.slane %v502, 4
        %v504 = vadd.f32 %v502, %v503
        %v505 = vrot.slane %v504, 2
        %v506 = vadd.f32 %v504, %v505
        %v507 = vrot.slane %v506, 1
        %v508 = vadd.f32 %v506, %v507
        %v510 = vsel %vm289, %v508, 0
        %512 = vmatprep.subr.mxu0 0.0
        %513 = vmatpush1.msra.mxu0 %v316
        %514 = vmatprep.subr.mxu0 0.0
        %515 = vmatpush1.msra.mxu0 0.0
        %516 = vmatprep.subr.mxu0 0.0
        %517 = vmatpush1.msra.mxu0 0.0
        %518 = vmatprep.subr.mxu0 0.0
        %519 = vmatpush1.msra.mxu0 0.0
        %520 = vmatprep.subr.mxu0 0.0
        %521 = vmatpush1.msra.mxu0 0.0
        %522 = vmatprep.subr.mxu0 0.0
        %523 = vmatpush1.msra.mxu0 0.0
        %524 = vmatprep.subr.mxu0 0.0
        %525 = vmatpush1.msra.mxu0 0.0
        %526 = vmatprep.subr.mxu0 0.0
        %527 = vmatpush1.msra.mxu0 0.0
        %528 = vmatprep.subr.mxu0 0.0
        %529 = vmatpush1.msra.mxu0 0.0
        %530 = vmatprep.subr.mxu0 0.0
        %531 = vmatpush1.msra.mxu0 0.0
        %532 = vmatprep.subr.mxu0 0.0
        %533 = vmatpush1.msra.mxu0 0.0
        %534 = vmatprep.subr.mxu0 0.0
        %535 = vmatpush1.msra.mxu0 0.0
        %536 = vmatprep.subr.mxu0 0.0
        %537 = vmatpush1.msra.mxu0 0.0
        %538 = vmatprep.subr.mxu0 0.0
        %539 = vmatpush1.msra.mxu0 0.0
        %540 = vmatprep.subr.mxu0 0.0
        %541 = vmatpush1.msra.mxu0 0.0
        %542 = vmatprep.subr.mxu0 0.0
        %543 = vmatpush1.msra.mxu0 0.0
        %544 = vmatprep.subr.mxu0 0.0
        %545 = vmatpush1.msra.mxu0 0.0
        %546 = vmatprep.subr.mxu0 0.0
        %547 = vmatpush1.msra.mxu0 0.0
        %548 = vmatprep.subr.mxu0 0.0
        %549 = vmatpush1.msra.mxu0 0.0
        %550 = vmatprep.subr.mxu0 0.0
        %551 = vmatpush1.msra.mxu0 0.0
        %552 = vmatprep.subr.mxu0 0.0
        %553 = vmatpush1.msra.mxu0 0.0
        %554 = vmatprep.subr.mxu0 0.0
        %555 = vmatpush1.msra.mxu0 0.0
        %556 = vmatprep.subr.mxu0 0.0
        %557 = vmatpush1.msra.mxu0 0.0
        %558 = vmatprep.subr.mxu0 0.0
        %559 = vmatpush1.msra.mxu0 0.0
        %560 = vmatprep.subr.mxu0 0.0
        %561 = vmatpush1.msra.mxu0 0.0
        %562 = vmatprep.subr.mxu0 0.0
        %563 = vmatpush1.msra.mxu0 0.0
        %564 = vmatprep.subr.mxu0 0.0
        %565 = vmatpush1.msra.mxu0 0.0
        %566 = vmatprep.subr.mxu0 0.0
        %567 = vmatpush1.msra.mxu0 0.0
        %568 = vmatprep.subr.mxu0 0.0
        %569 = vmatpush1.msra.mxu0 0.0
        %570 = vmatprep.subr.mxu0 0.0
        %571 = vmatpush1.msra.mxu0 0.0
        %572 = vmatprep.subr.mxu0 0.0
        %573 = vmatpush1.msra.mxu0 0.0
        %574 = vmatprep.subr.mxu0 0.0
        %575 = vmatpush1.msra.mxu0 0.0
        %576 = vmatprep.mubr.f32.mxu0 0.0
        %577 = vmatmul.mubr.f32.gmra.mrb[0].mxu0 %v510
        %v578 = vpop.f32.mrb[0].mxu0
        %v579 = vadd.f32 0.0, %v578
        %v580 = vpop.f32.mrb[0].mxu0
        %581 = vdwg.mxu0
        %v582 = vmul.f32 %v579, %v388
        %v583 = vadd.f32 %v582, 1e-06
        %v584 = vrsqrt.pop %v583
        %v586 = vsel %vm390, %v584, 0
        %588 = vmatprep.subr.mxu0 0.0
        %589 = vmatpush1.msra.mxu0 %v396
        %590 = vmatprep.subr.mxu0 0.0
        %591 = vmatpush1.msra.mxu0 0.0
        %592 = vmatprep.subr.mxu0 0.0
        %593 = vmatpush1.msra.mxu0 0.0
        %594 = vmatprep.subr.mxu0 0.0
        %595 = vmatpush1.msra.mxu0 0.0
        %596 = vmatprep.subr.mxu0 0.0
        %597 = vmatpush1.msra.mxu0 0.0
        %598 = vmatprep.subr.mxu0 0.0
        %599 = vmatpush1.msra.mxu0 0.0
        %600 = vmatprep.subr.mxu0 0.0
        %601 = vmatpush1.msra.mxu0 0.0
        %602 = vmatprep.subr.mxu0 0.0
        %603 = vmatpush1.msra.mxu0 0.0
        %604 = vmatprep.subr.mxu0 0.0
        %605 = vmatpush1.msra.mxu0 0.0
        %606 = vmatprep.subr.mxu0 0.0
        %607 = vmatpush1.msra.mxu0 0.0
        %608 = vmatprep.subr.mxu0 0.0
        %609 = vmatpush1.msra.mxu0 0.0
        %610 = vmatprep.subr.mxu0 0.0
        %611 = vmatpush1.msra.mxu0 0.0
        %612 = vmatprep.subr.mxu0 0.0
        %613 = vmatpush1.msra.mxu0 0.0
        %614 = vmatprep.subr.mxu0 0.0
        %615 = vmatpush1.msra.mxu0 0.0
        %616 = vmatprep.subr.mxu0 0.0
        %617 = vmatpush1.msra.mxu0 0.0
        %618 = vmatprep.subr.mxu0 0.0
        %619 = vmatpush1.msra.mxu0 0.0
        %620 = vmatprep.subr.mxu0 0.0
        %621 = vmatpush1.msra.mxu0 0.0
        %622 = vmatprep.subr.mxu0 0.0
        %623 = vmatpush1.msra.mxu0 0.0
        %624 = vmatprep.subr.mxu0 0.0
        %625 = vmatpush1.msra.mxu0 0.0
        %626 = vmatprep.subr.mxu0 0.0
        %627 = vmatpush1.msra.mxu0 0.0
        %628 = vmatprep.subr.mxu0 0.0
        %629 = vmatpush1.msra.mxu0 0.0
        %630 = vmatprep.subr.mxu0 0.0
        %631 = vmatpush1.msra.mxu0 0.0
        %632 = vmatprep.subr.mxu0 0.0
        %633 = vmatpush1.msra.mxu0 0.0
        %634 = vmatprep.subr.mxu0 0.0
        %635 = vmatpush1.msra.mxu0 0.0
        %636 = vmatprep.subr.mxu0 0.0
        %637 = vmatpush1.msra.mxu0 0.0
        %638 = vmatprep.subr.mxu0 0.0
        %639 = vmatpush1.msra.mxu0 0.0
        %640 = vmatprep.subr.mxu0 0.0
        %641 = vmatpush1.msra.mxu0 0.0
        %642 = vmatprep.subr.mxu0 0.0
        %643 = vmatpush1.msra.mxu0 0.0
        %644 = vmatprep.subr.mxu0 0.0
        %645 = vmatpush1.msra.mxu0 0.0
        %646 = vmatprep.subr.mxu0 0.0
        %647 = vmatpush1.msra.mxu0 0.0
        %648 = vmatprep.subr.mxu0 0.0
        %649 = vmatpush1.msra.mxu0 0.0
        %650 = vmatprep.subr.mxu0 0.0
        %651 = vmatpush1.msra.mxu0 0.0
        %652 = vmatprep.mubr.f32.mxu0 0.0
        %653 = vmatmul.mubr.f32.gmra.mrb[0].mxu0 %v586
        %v654 = vpop.f32.mrb[0].mxu0
        %v655 = vadd.f32 0.0, %v654
        %v656 = vpop.f32.mrb[0].mxu0
        %657 = vdwg.mxu0
        %v658 = vmul.f32 %v285, %v655
        %v660 = vlaneseq
        %v661 = vshrl.u32 %v660, 7
        %v662 = vsub.s32 0, %v661
        %v663 = vrot.slane %v658, %v662
        %v665 = vmul.f32 %v472, %v663
        %v666 = vmul.f32 %v473, %v663
        %v667 = vmul.f32 %v474, %v663
        %v668 = vmul.f32 %v475, %v663
        %v669 = vmul.f32 %v476, %v663
        %v670 = vmul.f32 %v477, %v663
        %v671 = vmul.f32 %v478, %v663
        %v672 = vmul.f32 %v479, %v663
        %v674 = vlaneseq
        %v675 = vshrl.u32 %v674, 7
        %v676 = vsub.s32 0, %v675
        %v677 = vrot.slane %v286, %v676
        %v679 = vadd.f32 %v665, %v677
        %v680 = vadd.f32 %v666, %v677
        %v681 = vadd.f32 %v667, %v677
        %v682 = vadd.f32 %v668, %v677
        %v683 = vadd.f32 %v669, %v677
        %v684 = vadd.f32 %v670, %v677
        %v685 = vadd.f32 %v671, %v677
        %v686 = vadd.f32 %v672, %v677
        %v687 = vxor.u32 %v679, 2147483648
        %v688 = vxor.u32 %v680, 2147483648
        %v689 = vxor.u32 %v681, 2147483648
        %v690 = vxor.u32 %v682, 2147483648
        %v691 = vxor.u32 %v683, 2147483648
        %v692 = vxor.u32 %v684, 2147483648
        %v693 = vxor.u32 %v685, 2147483648
        %v694 = vxor.u32 %v686, 2147483648
        %v695 = vmul.f32 %v687, 1.442695
        %v696 = vpow.pop %v695
        %v697 = vmul.f32 %v688, 1.442695
        %v698 = vpow.pop %v697
        %v699 = vmul.f32 %v689, 1.442695
        %v700 = vpow.pop %v699
        %v701 = vmul.f32 %v690, 1.442695
        %v702 = vpow.pop %v701
        %v703 = vmul.f32 %v691, 1.442695
        %v704 = vpow.pop %v703
        %v705 = vmul.f32 %v692, 1.442695
        %v706 = vpow.pop %v705
        %v707 = vmul.f32 %v693, 1.442695
        %v708 = vpow.pop %v707
        %v709 = vmul.f32 %v694, 1.442695
        %v710 = vpow.pop %v709
        %v711 = vadd.f32 %v696, 1.0
        %v712 = vadd.f32 %v698, 1.0
        %v713 = vadd.f32 %v700, 1.0
        %v714 = vadd.f32 %v702, 1.0
        %v715 = vadd.f32 %v704, 1.0
        %v716 = vadd.f32 %v706, 1.0
        %v717 = vadd.f32 %v708, 1.0
        %v718 = vadd.f32 %v710, 1.0
        %v719 = vrcp.pop %v711
        %v720 = vmul.f32 1.0, %v719
        %v721 = vrcp.pop %v712
        %v722 = vmul.f32 1.0, %v721
        %v723 = vrcp.pop %v713
        %v724 = vmul.f32 1.0, %v723
        %v725 = vrcp.pop %v714
        %v726 = vmul.f32 1.0, %v725
        %v727 = vrcp.pop %v715
        %v728 = vmul.f32 1.0, %v727
        %v729 = vrcp.pop %v716
        %v730 = vmul.f32 1.0, %v729
        %v731 = vrcp.pop %v717
        %v732 = vmul.f32 1.0, %v731
        %v733 = vrcp.pop %v718
        %v734 = vmul.f32 1.0, %v733
        %v735 = vmul.f32 %v679, %v720
        %v736 = vmul.f32 %v680, %v722
        %v737 = vmul.f32 %v681, %v724
        %v738 = vmul.f32 %v682, %v726
        %v739 = vmul.f32 %v683, %v728
        %v740 = vmul.f32 %v684, %v730
        %v741 = vmul.f32 %v685, %v732
        %v742 = vmul.f32 %v686, %v734
        %v752 = vrot.slane 0.0, 7
        %v753 = vrot.slane %v735, 7
        %v754 = vrot.slane %v736, 7
        %v755 = vrot.slane %v737, 7
        %v756 = vrot.slane %v738, 7
        %v757 = vrot.slane %v739, 7
        %v758 = vrot.slane %v740, 7
        %v759 = vrot.slane %v741, 7
        %v760 = vrot.slane %v742, 7
        %v770 = vsel %vm394, 0.0, %v752
        %v771 = vsel %vm394, 0.0, %v753
        %v772 = vsel %vm394, 0.0, %v754
        %v773 = vsel %vm394, 0.0, %v755
        %v774 = vsel %vm394, 0.0, %v756
        %v775 = vsel %vm394, 0.0, %v757
        %v776 = vsel %vm394, 0.0, %v758
        %v777 = vsel %vm394, 0.0, %v759
        %v778 = vsel %vm394, 0.0, %v760
        %v779 = vsel %vm394, %v752, 0.0
        %v780 = vsel %vm394, %v753, 0.0
        %v781 = vsel %vm394, %v754, 0.0
        %v782 = vsel %vm394, %v755, 0.0
        %v783 = vsel %vm394, %v756, 0.0
        %v784 = vsel %vm394, %v757, 0.0
        %v785 = vsel %vm394, %v758, 0.0
        %v786 = vsel %vm394, %v759, 0.0
        %v787 = vsel %vm394, %v760, 0.0
        %vm806 = vcmask 1046528
        %v807 = vrot.slane %v770, 1
        %v808 = vrot.slane %v779, 1
        %v809 = vsel %vm806, %v807, %v808
        %v810 = vrot.slane %v771, 1
        %v811 = vrot.slane %v780, 1
        %v812 = vsel %vm806, %v810, %v811
        %v813 = vrot.slane %v772, 1
        %v814 = vrot.slane %v781, 1
        %v815 = vsel %vm806, %v813, %v814
        %v816 = vrot.slane %v773, 1
        %v817 = vrot.slane %v782, 1
        %v818 = vsel %vm806, %v816, %v817
        %v819 = vrot.slane %v774, 1
        %v820 = vrot.slane %v783, 1
        %v821 = vsel %vm806, %v819, %v820
        %v822 = vrot.slane %v775, 1
        %v823 = vrot.slane %v784, 1
        %v824 = vsel %vm806, %v822, %v823
        %v825 = vrot.slane %v776, 1
        %v826 = vrot.slane %v785, 1
        %v827 = vsel %vm806, %v825, %v826
        %v828 = vrot.slane %v777, 1
        %v829 = vrot.slane %v786, 1
        %v830 = vsel %vm806, %v828, %v829
        %v831 = vrot.slane %v778, 1
        %v832 = vrot.slane %v787, 1
        %v833 = vsel %vm806, %v831, %v832
        %834 = vrot.lane.b32.xlu0 %v809, 4
        %v835 = vpop.permute.xlu0 %834
        %836 = vrot.lane.b32.xlu0 %v812, 4
        %v837 = vpop.permute.xlu0 %836
        %838 = vrot.lane.b32.xlu0 %v815, 4
        %v839 = vpop.permute.xlu0 %838
        %840 = vrot.lane.b32.xlu0 %v818, 4
        %v841 = vpop.permute.xlu0 %840
        %842 = vrot.lane.b32.xlu0 %v821, 4
        %v843 = vpop.permute.xlu0 %842
        %844 = vrot.lane.b32.xlu0 %v824, 4
        %v845 = vpop.permute.xlu0 %844
        %846 = vrot.lane.b32.xlu0 %v827, 4
        %v847 = vpop.permute.xlu0 %846
        %848 = vrot.lane.b32.xlu0 %v830, 4
        %v849 = vpop.permute.xlu0 %848
        %850 = vrot.lane.b32.xlu0 %v833, 4
        %v851 = vpop.permute.xlu0 %850
        %vm861 = vcmask 1045504
        %v862 = vrot.slane %v770, 2
        %v863 = vrot.slane %v779, 2
        %v864 = vsel %vm861, %v862, %v863
        %v865 = vrot.slane %v771, 2
        %v866 = vrot.slane %v780, 2
        %v867 = vsel %vm861, %v865, %v866
        %v868 = vrot.slane %v772, 2
        %v869 = vrot.slane %v781, 2
        %v870 = vsel %vm861, %v868, %v869
        %v871 = vrot.slane %v773, 2
        %v872 = vrot.slane %v782, 2
        %v873 = vsel %vm861, %v871, %v872
        %v874 = vrot.slane %v774, 2
        %v875 = vrot.slane %v783, 2
        %v876 = vsel %vm861, %v874, %v875
        %v877 = vrot.slane %v775, 2
        %v878 = vrot.slane %v784, 2
        %v879 = vsel %vm861, %v877, %v878
        %v880 = vrot.slane %v776, 2
        %v881 = vrot.slane %v785, 2
        %v882 = vsel %vm861, %v880, %v881
        %v883 = vrot.slane %v777, 2
        %v884 = vrot.slane %v786, 2
        %v885 = vsel %vm861, %v883, %v884
        %v886 = vrot.slane %v778, 2
        %v887 = vrot.slane %v787, 2
        %v888 = vsel %vm861, %v886, %v887
        %889 = vrot.lane.b32.xlu0 %v864, 8
        %v890 = vpop.permute.xlu0 %889
        %891 = vrot.lane.b32.xlu0 %v867, 8
        %v892 = vpop.permute.xlu0 %891
        %893 = vrot.lane.b32.xlu0 %v870, 8
        %v894 = vpop.permute.xlu0 %893
        %895 = vrot.lane.b32.xlu0 %v873, 8
        %v896 = vpop.permute.xlu0 %895
        %897 = vrot.lane.b32.xlu0 %v876, 8
        %v898 = vpop.permute.xlu0 %897
        %899 = vrot.lane.b32.xlu0 %v879, 8
        %v900 = vpop.permute.xlu0 %899
        %901 = vrot.lane.b32.xlu0 %v882, 8
        %v902 = vpop.permute.xlu0 %901
        %903 = vrot.lane.b32.xlu0 %v885, 8
        %v904 = vpop.permute.xlu0 %903
        %905 = vrot.lane.b32.xlu0 %v888, 8
        %v906 = vpop.permute.xlu0 %905
        %v916 = vsel %vm289, %v770, %v835
        %v917 = vsel %vm289, %v771, %v837
        %v918 = vsel %vm289, %v772, %v839
        %v919 = vsel %vm289, %v773, %v841
        %v920 = vsel %vm289, %v774, %v843
        %v921 = vsel %vm289, %v775, %v845
        %v922 = vsel %vm289, %v776, %v847
        %v923 = vsel %vm289, %v777, %v849
        %v924 = vsel %vm289, %v778, %v851
        %vm925 = vcmask 64512
        %v926 = vsel %vm925, %v916, %v890
        %v927 = vsel %vm925, %v917, %v892
        %v928 = vsel %vm925, %v918, %v894
        %v929 = vsel %vm925, %v919, %v896
        %v930 = vsel %vm925, %v920, %v898
        %v931 = vsel %vm925, %v921, %v900
        %v932 = vsel %vm925, %v922, %v902
        %v933 = vsel %vm925, %v923, %v904
        %v934 = vsel %vm925, %v924, %v906
        %v935 = vld [vmem:[%s5] sm:$0xff]
        %v936 = vld [vmem:[%s5 + $0x8] sm:$0xf]
        %v937 = vld [vmem:[%s5 + $0x10] sm:$0xff]
        %v938 = vld [vmem:[%s5 + $0x18] sm:$0xf]
        %v939 = vld [vmem:[%s5 + $0x20] sm:$0xff]
        %v940 = vld [vmem:[%s5 + $0x28] sm:$0xf]
        %v941 = vld [vmem:[%s6] sm:$0x1]
        %v943 = vlaneseq
        %v944 = vshrl.u32 %v943, 7
        %v945 = vsub.s32 0, %v944
        %v946 = vrot.slane %v941, %v945
        %vm948 = vcmask 97280
        %v950 = vsel %vm948, %v926, 0
        %v953 = vsel %vm948, %v927, 0
        %v956 = vsel %vm948, %v928, 0
        %v959 = vsel %vm948, %v929, 0
        %v962 = vsel %vm948, %v930, 0
        %v965 = vsel %vm948, %v931, 0
        %v968 = vsel %vm948, %v932, 0
        %v971 = vsel %vm948, %v933, 0
        %v974 = vsel %vm314, %v936, 0
        %976 = vmatprep.subr.mxu0 0.0
        %977 = vmatpush1.msra.mxu0 %v935
        %978 = vmatprep.subr.mxu0 0.0
        %979 = vmatpush1.msra.mxu0 %v974
        %980 = vmatprep.subr.mxu0 0.0
        %981 = vmatpush1.msra.mxu0 0.0
        %982 = vmatprep.subr.mxu0 0.0
        %983 = vmatpush1.msra.mxu0 0.0
        %984 = vmatprep.subr.mxu0 0.0
        %985 = vmatpush1.msra.mxu0 0.0
        %986 = vmatprep.subr.mxu0 0.0
        %987 = vmatpush1.msra.mxu0 0.0
        %988 = vmatprep.subr.mxu0 0.0
        %989 = vmatpush1.msra.mxu0 0.0
        %990 = vmatprep.subr.mxu0 0.0
        %991 = vmatpush1.msra.mxu0 0.0
        %992 = vmatprep.subr.mxu0 0.0
        %993 = vmatpush1.msra.mxu0 0.0
        %994 = vmatprep.subr.mxu0 0.0
        %995 = vmatpush1.msra.mxu0 0.0
        %996 = vmatprep.subr.mxu0 0.0
        %997 = vmatpush1.msra.mxu0 0.0
        %998 = vmatprep.subr.mxu0 0.0
        %999 = vmatpush1.msra.mxu0 0.0
        %1000 = vmatprep.subr.mxu0 0.0
        %1001 = vmatpush1.msra.mxu0 0.0
        %1002 = vmatprep.subr.mxu0 0.0
        %1003 = vmatpush1.msra.mxu0 0.0
        %1004 = vmatprep.subr.mxu0 0.0
        %1005 = vmatpush1.msra.mxu0 0.0
        %1006 = vmatprep.subr.mxu0 0.0
        %1007 = vmatpush1.msra.mxu0 0.0
        %1008 = vmatprep.subr.mxu0 0.0
        %1009 = vmatpush1.msra.mxu0 0.0
        %1010 = vmatprep.subr.mxu0 0.0
        %1011 = vmatpush1.msra.mxu0 0.0
        %1012 = vmatprep.subr.mxu0 0.0
        %1013 = vmatpush1.msra.mxu0 0.0
        %1014 = vmatprep.subr.mxu0 0.0
        %1015 = vmatpush1.msra.mxu0 0.0
        %1016 = vmatprep.subr.mxu0 0.0
        %1017 = vmatpush1.msra.mxu0 0.0
        %1018 = vmatprep.subr.mxu0 0.0
        %1019 = vmatpush1.msra.mxu0 0.0
        %1020 = vmatprep.subr.mxu0 0.0
        %1021 = vmatpush1.msra.mxu0 0.0
        %1022 = vmatprep.subr.mxu0 0.0
        %1023 = vmatpush1.msra.mxu0 0.0
        %1024 = vmatprep.subr.mxu0 0.0
        %1025 = vmatpush1.msra.mxu0 0.0
        %1026 = vmatprep.subr.mxu0 0.0
        %1027 = vmatpush1.msra.mxu0 0.0
        %1028 = vmatprep.subr.mxu0 0.0
        %1029 = vmatpush1.msra.mxu0 0.0
        %1030 = vmatprep.subr.mxu0 0.0
        %1031 = vmatpush1.msra.mxu0 0.0
        %1032 = vmatprep.subr.mxu0 0.0
        %1033 = vmatpush1.msra.mxu0 0.0
        %1034 = vmatprep.subr.mxu0 0.0
        %1035 = vmatpush1.msra.mxu0 0.0
        %1036 = vmatprep.subr.mxu0 0.0
        %1037 = vmatpush1.msra.mxu0 0.0
        %1038 = vmatprep.subr.mxu0 0.0
        %1039 = vmatpush1.msra.mxu0 0.0
        %1040 = vmatprep.mubr.f32.mxu0 0.0
        %1041 = vmatmul.mubr.f32.gmra.mrb[0].mxu0 %v950
        %v1042 = vpop.f32.mrb[0].mxu0
        %v1043 = vadd.f32 0.0, %v1042
        %v1044 = vpop.f32.mrb[0].mxu0
        %1045 = vmatprep.mubr.f32.mxu0 0.0
        %1046 = vmatmul.mubr.f32.gmra.mrb[0].mxu0 %v953
        %v1047 = vpop.f32.mrb[0].mxu0
        %v1048 = vadd.f32 0.0, %v1047
        %v1049 = vpop.f32.mrb[0].mxu0
        %1050 = vmatprep.mubr.f32.mxu0 0.0
        %1051 = vmatmul.mubr.f32.gmra.mrb[0].mxu0 %v956
        %v1052 = vpop.f32.mrb[0].mxu0
        %v1053 = vadd.f32 0.0, %v1052
        %v1054 = vpop.f32.mrb[0].mxu0
        %1055 = vmatprep.mubr.f32.mxu0 0.0
        %1056 = vmatmul.mubr.f32.gmra.mrb[0].mxu0 %v959
        %v1057 = vpop.f32.mrb[0].mxu0
        %v1058 = vadd.f32 0.0, %v1057
        %v1059 = vpop.f32.mrb[0].mxu0
        %1060 = vmatprep.mubr.f32.mxu0 0.0
        %1061 = vmatmul.mubr.f32.gmra.mrb[0].mxu0 %v962
        %v1062 = vpop.f32.mrb[0].mxu0
        %v1063 = vadd.f32 0.0, %v1062
        %v1064 = vpop.f32.mrb[0].mxu0
        %1065 = vmatprep.mubr.f32.mxu0 0.0
        %1066 = vmatmul.mubr.f32.gmra.mrb[0].mxu0 %v965
        %v1067 = vpop.f32.mrb[0].mxu0
        %v1068 = vadd.f32 0.0, %v1067
        %v1069 = vpop.f32.mrb[0].mxu0
        %1070 = vmatprep.mubr.f32.mxu0 0.0
        %1071 = vmatmul.mubr.f32.gmra.mrb[0].mxu0 %v968
        %v1072 = vpop.f32.mrb[0].mxu0
        %v1073 = vadd.f32 0.0, %v1072
        %v1074 = vpop.f32.mrb[0].mxu0
        %1075 = vmatprep.mubr.f32.mxu0 0.0
        %1076 = vmatmul.mubr.f32.gmra.mrb[0].mxu0 %v971
        %v1077 = vpop.f32.mrb[0].mxu0
        %v1078 = vadd.f32 0.0, %v1077
        %v1079 = vpop.f32.mrb[0].mxu0
        %1080 = vdwg.mxu0
        %v1081 = vadd.f32 %v946, %v1043
        %v1082 = vadd.f32 %v946, %v1048
        %v1083 = vadd.f32 %v946, %v1053
        %v1084 = vadd.f32 %v946, %v1058
        %v1085 = vadd.f32 %v946, %v1063
        %v1086 = vadd.f32 %v946, %v1068
        %v1087 = vadd.f32 %v946, %v1073
        %v1088 = vadd.f32 %v946, %v1078
        %v1090 = vsel %vm948, %v934, 0
        %v1093 = vsel %vm314, %v938, 0
        %1095 = vmatprep.subr.mxu0 0.0
        %1096 = vmatpush1.msra.mxu0 %v937
        %1097 = vmatprep.subr.mxu0 0.0
        %1098 = vmatpush1.msra.mxu0 %v1093
        %1099 = vmatprep.subr.mxu0 0.0
        %1100 = vmatpush1.msra.mxu0 0.0
        %1101 = vmatprep.subr.mxu0 0.0
        %1102 = vmatpush1.msra.mxu0 0.0
        %1103 = vmatprep.subr.mxu0 0.0
        %1104 = vmatpush1.msra.mxu0 0.0
        %1105 = vmatprep.subr.mxu0 0.0
        %1106 = vmatpush1.msra.mxu0 0.0
        %1107 = vmatprep.subr.mxu0 0.0
        %1108 = vmatpush1.msra.mxu0 0.0
        %1109 = vmatprep.subr.mxu0 0.0
        %1110 = vmatpush1.msra.mxu0 0.0
        %1111 = vmatprep.subr.mxu0 0.0
        %1112 = vmatpush1.msra.mxu0 0.0
        %1113 = vmatprep.subr.mxu0 0.0
        %1114 = vmatpush1.msra.mxu0 0.0
        %1115 = vmatprep.subr.mxu0 0.0
        %1116 = vmatpush1.msra.mxu0 0.0
        %1117 = vmatprep.subr.mxu0 0.0
        %1118 = vmatpush1.msra.mxu0 0.0
        %1119 = vmatprep.subr.mxu0 0.0
        %1120 = vmatpush1.msra.mxu0 0.0
        %1121 = vmatprep.subr.mxu0 0.0
        %1122 = vmatpush1.msra.mxu0 0.0
        %1123 = vmatprep.subr.mxu0 0.0
        %1124 = vmatpush1.msra.mxu0 0.0
        %1125 = vmatprep.subr.mxu0 0.0
        %1126 = vmatpush1.msra.mxu0 0.0
        %1127 = vmatprep.subr.mxu0 0.0
        %1128 = vmatpush1.msra.mxu0 0.0
        %1129 = vmatprep.subr.mxu0 0.0
        %1130 = vmatpush1.msra.mxu0 0.0
        %1131 = vmatprep.subr.mxu0 0.0
        %1132 = vmatpush1.msra.mxu0 0.0
        %1133 = vmatprep.subr.mxu0 0.0
        %1134 = vmatpush1.msra.mxu0 0.0
        %1135 = vmatprep.subr.mxu0 0.0
        %1136 = vmatpush1.msra.mxu0 0.0
        %1137 = vmatprep.subr.mxu0 0.0
        %1138 = vmatpush1.msra.mxu0 0.0
        %1139 = vmatprep.subr.mxu0 0.0
        %1140 = vmatpush1.msra.mxu0 0.0
        %1141 = vmatprep.subr.mxu0 0.0
        %1142 = vmatpush1.msra.mxu0 0.0
        %1143 = vmatprep.subr.mxu0 0.0
        %1144 = vmatpush1.msra.mxu0 0.0
        %1145 = vmatprep.subr.mxu0 0.0
        %1146 = vmatpush1.msra.mxu0 0.0
        %1147 = vmatprep.subr.mxu0 0.0
        %1148 = vmatpush1.msra.mxu0 0.0
        %1149 = vmatprep.subr.mxu0 0.0
        %1150 = vmatpush1.msra.mxu0 0.0
        %1151 = vmatprep.subr.mxu0 0.0
        %1152 = vmatpush1.msra.mxu0 0.0
        %1153 = vmatprep.subr.mxu0 0.0
        %1154 = vmatpush1.msra.mxu0 0.0
        %1155 = vmatprep.subr.mxu0 0.0
        %1156 = vmatpush1.msra.mxu0 0.0
        %1157 = vmatprep.subr.mxu0 0.0
        %1158 = vmatpush1.msra.mxu0 0.0
        %1159 = vmatprep.mubr.f32.mxu0 0.0
        %1160 = vmatmul.mubr.f32.gmra.mrb[0].mxu0 %v953
        %v1161 = vpop.f32.mrb[0].mxu0
        %v1162 = vadd.f32 0.0, %v1161
        %v1163 = vpop.f32.mrb[0].mxu0
        %1164 = vmatprep.mubr.f32.mxu0 0.0
        %1165 = vmatmul.mubr.f32.gmra.mrb[0].mxu0 %v956
        %v1166 = vpop.f32.mrb[0].mxu0
        %v1167 = vadd.f32 0.0, %v1166
        %v1168 = vpop.f32.mrb[0].mxu0
        %1169 = vmatprep.mubr.f32.mxu0 0.0
        %1170 = vmatmul.mubr.f32.gmra.mrb[0].mxu0 %v959
        %v1171 = vpop.f32.mrb[0].mxu0
        %v1172 = vadd.f32 0.0, %v1171
        %v1173 = vpop.f32.mrb[0].mxu0
        %1174 = vmatprep.mubr.f32.mxu0 0.0
        %1175 = vmatmul.mubr.f32.gmra.mrb[0].mxu0 %v962
        %v1176 = vpop.f32.mrb[0].mxu0
        %v1177 = vadd.f32 0.0, %v1176
        %v1178 = vpop.f32.mrb[0].mxu0
        %1179 = vmatprep.mubr.f32.mxu0 0.0
        %1180 = vmatmul.mubr.f32.gmra.mrb[0].mxu0 %v965
        %v1181 = vpop.f32.mrb[0].mxu0
        %v1182 = vadd.f32 0.0, %v1181
        %v1183 = vpop.f32.mrb[0].mxu0
        %1184 = vmatprep.mubr.f32.mxu0 0.0
        %1185 = vmatmul.mubr.f32.gmra.mrb[0].mxu0 %v968
        %v1186 = vpop.f32.mrb[0].mxu0
        %v1187 = vadd.f32 0.0, %v1186
        %v1188 = vpop.f32.mrb[0].mxu0
        %1189 = vmatprep.mubr.f32.mxu0 0.0
        %1190 = vmatmul.mubr.f32.gmra.mrb[0].mxu0 %v971
        %v1191 = vpop.f32.mrb[0].mxu0
        %v1192 = vadd.f32 0.0, %v1191
        %v1193 = vpop.f32.mrb[0].mxu0
        %1194 = vmatprep.mubr.f32.mxu0 0.0
        %1195 = vmatmul.mubr.f32.gmra.mrb[0].mxu0 %v1090
        %v1196 = vpop.f32.mrb[0].mxu0
        %v1197 = vadd.f32 0.0, %v1196
        %v1198 = vpop.f32.mrb[0].mxu0
        %1199 = vdwg.mxu0
        %v1200 = vadd.f32 %v1081, %v1162
        %v1201 = vadd.f32 %v1082, %v1167
        %v1202 = vadd.f32 %v1083, %v1172
        %v1203 = vadd.f32 %v1084, %v1177
        %v1204 = vadd.f32 %v1085, %v1182
        %v1205 = vadd.f32 %v1086, %v1187
        %v1206 = vadd.f32 %v1087, %v1192
        %v1207 = vadd.f32 %v1088, %v1197
        %v1209 = vsel %vm314, %v940, 0
        %1211 = vmatprep.subr.mxu0 0.0
        %1212 = vmatpush1.msra.mxu0 %v939
        %1213 = vmatprep.subr.mxu0 0.0
        %1214 = vmatpush1.msra.mxu0 %v1209
        %1215 = vmatprep.subr.mxu0 0.0
        %1216 = vmatpush1.msra.mxu0 0.0
        %1217 = vmatprep.subr.mxu0 0.0
        %1218 = vmatpush1.msra.mxu0 0.0
        %1219 = vmatprep.subr.mxu0 0.0
        %1220 = vmatpush1.msra.mxu0 0.0
        %1221 = vmatprep.subr.mxu0 0.0
        %1222 = vmatpush1.msra.mxu0 0.0
        %1223 = vmatprep.subr.mxu0 0.0
        %1224 = vmatpush1.msra.mxu0 0.0
        %1225 = vmatprep.subr.mxu0 0.0
        %1226 = vmatpush1.msra.mxu0 0.0
        %1227 = vmatprep.subr.mxu0 0.0
        %1228 = vmatpush1.msra.mxu0 0.0
        %1229 = vmatprep.subr.mxu0 0.0
        %1230 = vmatpush1.msra.mxu0 0.0
        %1231 = vmatprep.subr.mxu0 0.0
        %1232 = vmatpush1.msra.mxu0 0.0
        %1233 = vmatprep.subr.mxu0 0.0
        %1234 = vmatpush1.msra.mxu0 0.0
        %1235 = vmatprep.subr.mxu0 0.0
        %1236 = vmatpush1.msra.mxu0 0.0
        %1237 = vmatprep.subr.mxu0 0.0
        %1238 = vmatpush1.msra.mxu0 0.0
        %1239 = vmatprep.subr.mxu0 0.0
        %1240 = vmatpush1.msra.mxu0 0.0
        %1241 = vmatprep.subr.mxu0 0.0
        %1242 = vmatpush1.msra.mxu0 0.0
        %1243 = vmatprep.subr.mxu0 0.0
        %1244 = vmatpush1.msra.mxu0 0.0
        %1245 = vmatprep.subr.mxu0 0.0
        %1246 = vmatpush1.msra.mxu0 0.0
        %1247 = vmatprep.subr.mxu0 0.0
        %1248 = vmatpush1.msra.mxu0 0.0
        %1249 = vmatprep.subr.mxu0 0.0
        %1250 = vmatpush1.msra.mxu0 0.0
        %1251 = vmatprep.subr.mxu0 0.0
        %1252 = vmatpush1.msra.mxu0 0.0
        %1253 = vmatprep.subr.mxu0 0.0
        %1254 = vmatpush1.msra.mxu0 0.0
        %1255 = vmatprep.subr.mxu0 0.0
        %1256 = vmatpush1.msra.mxu0 0.0
        %1257 = vmatprep.subr.mxu0 0.0
        %1258 = vmatpush1.msra.mxu0 0.0
        %1259 = vmatprep.subr.mxu0 0.0
        %1260 = vmatpush1.msra.mxu0 0.0
        %1261 = vmatprep.subr.mxu0 0.0
        %1262 = vmatpush1.msra.mxu0 0.0
        %1263 = vmatprep.subr.mxu0 0.0
        %1264 = vmatpush1.msra.mxu0 0.0
        %1265 = vmatprep.subr.mxu0 0.0
        %1266 = vmatpush1.msra.mxu0 0.0
        %1267 = vmatprep.subr.mxu0 0.0
        %1268 = vmatpush1.msra.mxu0 0.0
        %1269 = vmatprep.subr.mxu0 0.0
        %1270 = vmatpush1.msra.mxu0 0.0
        %1271 = vmatprep.subr.mxu0 0.0
        %1272 = vmatpush1.msra.mxu0 0.0
        %1273 = vmatprep.subr.mxu0 0.0
        %1274 = vmatpush1.msra.mxu0 0.0
        %1275 = vmatprep.mubr.f32.mxu0 0.0
        %1276 = vmatmul.mubr.f32.gmra.mrb[0].mxu0 %v956
        %v1277 = vpop.f32.mrb[0].mxu0
        %v1278 = vadd.f32 0.0, %v1277
        %v1279 = vpop.f32.mrb[0].mxu0
        %1280 = vmatprep.mubr.f32.mxu0 0.0
        %1281 = vmatmul.mubr.f32.gmra.mrb[0].mxu0 %v959
        %v1282 = vpop.f32.mrb[0].mxu0
        %v1283 = vadd.f32 0.0, %v1282
        %v1284 = vpop.f32.mrb[0].mxu0
        %1285 = vmatprep.mubr.f32.mxu0 0.0
        %1286 = vmatmul.mubr.f32.gmra.mrb[0].mxu0 %v962
        %v1287 = vpop.f32.mrb[0].mxu0
        %v1288 = vadd.f32 0.0, %v1287
        %v1289 = vpop.f32.mrb[0].mxu0
        %1290 = vmatprep.mubr.f32.mxu0 0.0
        %1291 = vmatmul.mubr.f32.gmra.mrb[0].mxu0 %v965
        %v1292 = vpop.f32.mrb[0].mxu0
        %v1293 = vadd.f32 0.0, %v1292
        %v1294 = vpop.f32.mrb[0].mxu0
        %1295 = vmatprep.mubr.f32.mxu0 0.0
        %1296 = vmatmul.mubr.f32.gmra.mrb[0].mxu0 %v968
        %v1297 = vpop.f32.mrb[0].mxu0
        %v1298 = vadd.f32 0.0, %v1297
        %v1299 = vpop.f32.mrb[0].mxu0
        %1300 = vmatprep.mubr.f32.mxu0 0.0
        %1301 = vmatmul.mubr.f32.gmra.mrb[0].mxu0 %v971
        %v1302 = vpop.f32.mrb[0].mxu0
        %v1303 = vadd.f32 0.0, %v1302
        %v1304 = vpop.f32.mrb[0].mxu0
        %1305 = vmatprep.mubr.f32.mxu0 0.0
        %1306 = vmatmul.mubr.f32.gmra.mrb[0].mxu0 %v1090
        %v1307 = vpop.f32.mrb[0].mxu0
        %v1308 = vadd.f32 0.0, %v1307
        %v1309 = vpop.f32.mrb[0].mxu0
        %1310 = vmatprep.mubr.f32.mxu0 0.0
        %1311 = vmatmul.mubr.f32.gmra.mrb[0].mxu0 %v950
        %v1312 = vpop.f32.mrb[0].mxu0
        %v1313 = vadd.f32 0.0, %v1312
        %v1314 = vpop.f32.mrb[0].mxu0
        %1315 = vdwg.mxu0
        %v1316 = vadd.f32 %v1200, %v1278
        %v1317 = vadd.f32 %v1201, %v1283
        %v1318 = vadd.f32 %v1202, %v1288
        %v1319 = vadd.f32 %v1203, %v1293
        %v1320 = vadd.f32 %v1204, %v1298
        %v1321 = vadd.f32 %v1205, %v1303
        %v1322 = vadd.f32 %v1206, %v1308
        %v1323 = vadd.f32 %v1207, %v1313
        %1324 = vst.msk [vmem:[%s271] sm:$0xff] %vm925, %v1316
        %1325 = vst.msk [vmem:[%s271 + $0x8] sm:$0xff] %vm925, %v1317
        %1326 = vst.msk [vmem:[%s271 + $0x10] sm:$0xff] %vm925, %v1318
        %1327 = vst.msk [vmem:[%s271 + $0x18] sm:$0xff] %vm925, %v1319
        %1328 = vst.msk [vmem:[%s271 + $0x20] sm:$0xff] %vm925, %v1320
        %1329 = vst.msk [vmem:[%s271 + $0x28] sm:$0xff] %vm925, %v1321
        %1330 = vst.msk [vmem:[%s271 + $0x30] sm:$0xff] %vm925, %v1322
        %1331 = vst.msk [vmem:[%s271 + $0x38] sm:$0xff] %vm925, %v1323
        %s1332 = sand.u32 %s181, 1
        %s1333 = scalar_lea.sflag [#allocation3], %s1332
        %s1334 = sand.u32 %s181, 1
        %s1335 = smul.addr %s1334, 64
        %s1336 = scalar_lea.vmem [#allocation2], %s1335
        // Predicated region
        $region49: #{tpu_custom_call.1} parent=47 // pred_check
          %p1337 = pneg %p191
        $region50: #{tpu_custom_call.1} parent=47 // pred_check_branch
          %1339 = sbr.rel (%p1337) target = $region52
        $region51: #{tpu_custom_call.1} parent=47 // pred_region
          %s1341 = ssub.s32 1024, 1024
          %1342 = vsyncadd %s1333, %s1341
          %s1343 = smul.addr %s21, 8
          %s1344 = smul.addr %s1343, 128
          %s1345 = scalar_lea.hbm %s7, %s1344
          %s1346 = sshll.u32 %s1336, 4
          %s1347 = int_to_ptr.vmem [resolvable:$true] %s1346
          %1352 = dma.vmem_to_hbm [thread:$0]  %s1347, 1024, %s1345, %s1333, 128, 128, 8
        $region52: #{tpu_custom_call.1} parent=47 // pred_fallthru
          _
      $region48: #{tpu_custom_call.1} parent=5 // pred_fallthru
        _
      %p1353 = scmp.le.s32.totalorder 2, %s16
      // Predicated region
      $region53: #{tpu_custom_call.1} parent=5 // pred_check
        %p1354 = pneg %p1353
      $region54: #{tpu_custom_call.1} parent=5 // pred_check_branch
        %1356 = sbr.rel (%p1354) target = $region56
      $region55: #{tpu_custom_call.1} parent=5 // pred_region
        %s1357 = ssub.s32 %s16, 2
        // Predicated region
        $region57: #{tpu_custom_call.1} parent=55 // pred_check
          %p1358 = pneg %p197
        $region58: #{tpu_custom_call.1} parent=55 // pred_check_branch
          %1360 = sbr.rel (%p1358) target = $region60
        $region59: #{tpu_custom_call.1} parent=55 // pred_region
          %s1361 = sand.u32 %s182, 1
          %s1362 = scalar_lea.sflag [#allocation3], %s1361
          %s1363 = sand.u32 %s182, 1
          %s1364 = smul.addr %s1363, 64
          %s1365 = scalar_lea.vmem [#allocation2], %s1364
          %1366 = dma.done %s1362, 1024
        $region60: #{tpu_custom_call.1} parent=55 // pred_fallthru
          _
      $region56: #{tpu_custom_call.1} parent=5 // pred_fallthru
        _
    $region6: #{tpu_custom_call.1} parent=1 // loop_footer
      %s20 = sadd.s32 1, %s16
    $region7: #{tpu_custom_call.1} parent=1 // loop_footer_branch
      %15 = sbr.rel target = $region3
    $region8: #{tpu_custom_call.1} parent=1 // loop_exit
      _
    %1367 = vsyncpa [#allocation3], 1
    %s1368 = scalar_lea.sflag [#allocation3], 1
    %1369 = vsyncpa %s1368, 1

</llo_original>
